<compile_context>
chip_gen: v7x
topology: tpu7x:2x2x1
jax: 0.10.0
libtpu: 0.0.40
codegen_flags: <defaults>
</compile_context>

<pallas_src>
import functools

import jax
import jax.numpy as jnp
from jax import lax
from jax.experimental import pallas as pl
from jax.experimental.pallas import tpu as pltpu


_INV_SQRT2 = 0.7071067811865476
_NEG_BIG = -1e30  # masks lane-padded logit columns before the softmax


# ----------------------------- in-kernel math -------------------------------

def _gelu_exact(x):
    # nn.GELU() / F.gelu(approximate='none'): 0.5*x*(1+erf(x/sqrt(2)))
    return 0.5 * x * (1.0 + lax.erf(x * _INV_SQRT2))


def _gelu_tanh(x):
    # tanh-approximate GELU: transcendental rides the otherwise-idle EUP slot
    # (useful on v5e if the bundle dump shows VALU as the binding slot).
    return jax.nn.gelu(x, approximate=True)


def _layer_norm(x, gamma, beta, n_true, eps=1e-5):
    # Fused single-pass LayerNorm over lane-padded features.
    # Invariants maintained by the wrapper: padded lanes of x are exactly 0 and
    # gamma/beta are zero-padded, so the sums below equal the true-feature sums
    # and the padded output lanes come out as exactly 0 again.
    inv_n = 1.0 / n_true
    s = jnp.sum(x, axis=-1, keepdims=True)
    ss = jnp.sum(x * x, axis=-1, keepdims=True)
    mu = s * inv_n
    var = ss * inv_n - mu * mu
    inv = lax.rsqrt(var + eps)
    return (x - mu) * inv * gamma + beta


def _mm(a, b):
    # Cast activations to the weight dtype (bf16 MXU fast path), accumulate in f32.
    return jnp.dot(a.astype(b.dtype), b, preferred_element_type=jnp.float32)


# --------------------------------- kernel -----------------------------------

def survival_transformer_kernel(
    num_layers, d_true, use_tanh_gelu,
    # inputs (x tiled over the batch grid; everything else VMEM-resident)
    x_ref, wemb_ref, bemb_ref,
    wv_ref, bv_ref, wo_ref, bo_ref,
    g1_ref, bt1_ref, w1_ref, b1_ref,
    w2_ref, b2_ref, g2_ref, bt2_ref,
    gh_ref, bhn_ref, wh1_ref, bh1_ref, wh2_ref, bh2_ref,
    # output (lane-padded to a multiple of 128 columns)
    out_ref,
):
    gelu = _gelu_tanh if use_tanh_gelu else _gelu_exact

    # ---- embedding: Linear(input_dim -> d_model) ----
    h = _mm(x_ref[...], wemb_ref[...]) + bemb_ref[...]            # [TB, DP] f32

    # ---- TransformerEncoder (post-norm, seq_len == 1) ----
    # softmax over a single key == 1 exactly, so MHA == out_proj(v_proj(h)).
    # TODO(synk): for num_layers > 8 switch this Python unroll to an "arbitrary"
    # grid axis (streaming per-layer weights) to bound instruction count / VMEM.
    for l in range(num_layers):
        v = _mm(h, wv_ref[l]) + bv_ref[l]                         # [TB, DP]
        sa = _mm(v, wo_ref[l]) + bo_ref[l]                        # [TB, DP]
        h = _layer_norm(h + sa, g1_ref[l], bt1_ref[l], d_true)    # norm1

        ff = _mm(gelu(_mm(h, w1_ref[l]) + b1_ref[l]), w2_ref[l]) + b2_ref[l]
        h = _layer_norm(h + ff, g2_ref[l], bt2_ref[l], d_true)    # norm2

    # ---- head: LayerNorm -> Linear -> GELU -> (Dropout=id) -> Linear ----
    h = _layer_norm(h, gh_ref[...], bhn_ref[...], d_true)
    h = gelu(_mm(h, wh1_ref[...]) + bh1_ref[...])                 # [TB, HP]
    logits = _mm(h, wh2_ref[...]) + bh2_ref[...]                  # [TB, KP]
    # padded k_bins columns carry logit ~ -1e30 (zero weight cols + -1e30 bias)
    # -> exp == 0, so the softmax over real bins is exact.

    # ---- softmax over the k_bins axis (EUP reciprocal for the denominator) ----
    m = jnp.max(logits, axis=-1, keepdims=True)
    e = jnp.exp(logits - m)
    denom = jnp.sum(e, axis=-1, keepdims=True)
    out_ref[...] = (e * pl.reciprocal(denom, approx=True)).astype(out_ref.dtype)


# -------------------------------- wrapper ------------------------------------

def _round_up(n, m):
    return ((n + m - 1) // m) * m


def _cdiv(a, b):
    return -(-a // b)


def _pad_axis(a, axis, new_size, value=0.0):
    if new_size == a.shape[axis]:
        return a
    pad = [(0, 0)] * a.ndim
    pad[axis] = (0, new_size - a.shape[axis])
    return jnp.pad(a, pad, constant_values=value)


def survival_transformer_forward(x, params, num_layers, *,
                                 weight_dtype=jnp.bfloat16,
                                 out_dtype=jnp.float32,
                                 tile_b=512,
                                 feature_multiple=128,
                                 gelu_approx=False):
    """Forward pass of SurvivalTransformer as one Pallas kernel.

    feature_multiple: lane padding target for d_model / dim_ff / head hidden dim.
      128 is optimal on v5e; use 256 on v6e/v7x when the real dims are >= 128.
    out_dtype: use jnp.bfloat16 to halve output HBM traffic when downstream
      tolerates it (softmax probs feed log/cumsum in the loss, so f32 default).
    """
    B, input_dim = x.shape
    D = params["W_emb"].shape[1]
    FF = params["W1"].shape[2]
    H = params["Wh1"].shape[1]
    K = params["Wh2"].shape[1]

    # ---- lane padding of all feature dims (zero-padded weights keep padded lanes 0) ----
    DP = _round_up(D, feature_multiple)
    FFP = _round_up(FF, feature_multiple)
    HP = _round_up(H, feature_multiple)
    KP = _round_up(K, 128)

    W_emb = _pad_axis(params["W_emb"], 1, DP)
    b_emb = _pad_axis(params["b_emb"], 1, DP)
    Wv = _pad_axis(_pad_axis(params["Wv"], 1, DP), 2, DP)
    bv = _pad_axis(params["bv"], 2, DP)
    Wo = _pad_axis(_pad_axis(params["Wo"], 1, DP), 2, DP)
    bo = _pad_axis(params["bo"], 2, DP)
    g1 = _pad_axis(params["g1"], 2, DP)      # zero-padded gamma -> LN output padded lanes == 0
    bt1 = _pad_axis(params["bt1"], 2, DP)
    W1 = _pad_axis(_pad_axis(params["W1"], 1, DP), 2, FFP)
    b1 = _pad_axis(params["b1"], 2, FFP)
    W2 = _pad_axis(_pad_axis(params["W2"], 1, FFP), 2, DP)
    b2 = _pad_axis(params["b2"], 2, DP)
    g2 = _pad_axis(params["g2"], 2, DP)
    bt2 = _pad_axis(params["bt2"], 2, DP)
    gh = _pad_axis(params["gh"], 1, DP)
    bh = _pad_axis(params["bh"], 1, DP)
    Wh1 = _pad_axis(_pad_axis(params["Wh1"], 0, DP), 1, HP)
    bh1 = _pad_axis(params["bh1"], 1, HP)
    Wh2 = _pad_axis(_pad_axis(params["Wh2"], 0, HP), 1, KP)
    bh2 = _pad_axis(params["bh2"], 1, KP, value=_NEG_BIG)

    # ---- bf16 weights for the MXU matmuls (f32 accumulation in-kernel) ----
    def wcast(w):
        return w.astype(weight_dtype)

    # ---- batch tiling: multiple of 16 (bf16 sublane tile), >=2 steps when possible ----
    n_tiles = max(1, _cdiv(B, tile_b))
    TILE_B = _round_up(_cdiv(B, n_tiles), 16)
    if n_tiles == 1 and B > 16:
        # v7x megacore: give the second TensorCore a grid step to work on.
        TILE_B = _round_up(_cdiv(B, 2), 16)
    B_pad = _round_up(B, TILE_B)
    if B_pad != B:
        x = jnp.pad(x, ((0, B_pad - B), (0, 0)))
    nb = B_pad // TILE_B

    inputs = (
        x,
        wcast(W_emb), b_emb,
        wcast(Wv), bv, wcast(Wo), bo,
        g1, bt1, wcast(W1), b1,
        wcast(W2), b2, g2, bt2,
        gh, bh, wcast(Wh1), bh1, wcast(Wh2), bh2,
    )

    def nbytes(a):
        return int(a.size) * a.dtype.itemsize

    weight_bytes = sum(nbytes(a) for a in inputs[1:])

    # ---- generation-aware VMEM budget (v7x has 64 MiB/TC, v5e/v6e 128 MiB) ----
    try:
        vmem_cap = int(pltpu.get_tpu_info().vmem_capacity_bytes)
    except Exception:
        vmem_cap = 64 << 20  # conservative fallback = v7x per-TC capacity

    # Single-buffer the VMEM-resident weights when double-buffering them would
    # consume a large slice of VMEM (big configs on v7x); otherwise keep default.
    single_buffer_weights = (2 * weight_bytes) > (vmem_cap // 3)
    weight_buffers = 1 if single_buffer_weights else 2

    out_itemsize = jnp.dtype(out_dtype).itemsize
    io_bytes = 2 * TILE_B * (input_dim * 4 + KP * out_itemsize)   # double-buffered x/out tiles
    act_bytes = 8 * TILE_B * max(DP, FFP, HP, KP) * 4             # working activations
    budget = weight_buffers * weight_bytes + io_bytes + act_bytes + (8 << 20)
    vmem_limit = int(min(vmem_cap - (8 << 20), budget))

    def resident(a):
        # Whole array in VMEM with a constant block index: never re-DMA'd per step.
        nd = a.ndim
        if single_buffer_weights:
            return pl.BlockSpec(a.shape, lambda i, nd=nd: (0,) * nd,
                                pipeline_mode=pl.Buffered(1))
        return pl.BlockSpec(a.shape, lambda i, nd=nd: (0,) * nd)

    in_specs = [pl.BlockSpec((TILE_B, input_dim), lambda i: (i, 0))]
    in_specs += [resident(a) for a in inputs[1:]]
    out_spec = pl.BlockSpec((TILE_B, KP), lambda i: (i, 0))

    # ---- advisory cost estimate for the XLA scheduler (padded dims) ----
    flops = 2 * B_pad * (input_dim * DP
                         + num_layers * (2 * DP * DP + 2 * DP * FFP)
                         + DP * HP + HP * KP)
    transcendentals = B_pad * (num_layers * (FFP + 2) + HP + KP + 2)
    bytes_accessed = weight_bytes + nbytes(x) + B_pad * KP * out_itemsize

    kernel = functools.partial(survival_transformer_kernel,
                               num_layers, D, bool(gelu_approx))
    out_padded = pl.pallas_call(
        kernel,
        out_shape=jax.ShapeDtypeStruct((B_pad, KP), out_dtype),
        grid_spec=pltpu.PrefetchScalarGridSpec(
            num_scalar_prefetch=0,
            grid=(nb,),
            in_specs=in_specs,
            out_specs=out_spec,
        ),
        compiler_params=pltpu.CompilerParams(
            dimension_semantics=("parallel",),
            vmem_limit_bytes=vmem_limit,
        ),
        cost_estimate=pl.CostEstimate(
            flops=int(flops),
            transcendentals=int(transcendentals),
            bytes_accessed=int(bytes_accessed),
        ),
    )(*inputs)

    # Drop batch padding and the lane padding on k_bins; upcast if bf16 output.
    out = out_padded[:B, :K]
    return out if out.dtype == jnp.float32 else out.astype(jnp.float32)


# --------------------------- deterministic params ----------------------------

def init_params(key, input_dim, d_model, dim_ff, k_bins, num_layers):
    """Deterministic synthetic parameters. All matrices stored as [in, out]."""
    ks = iter(jax.random.split(key, 64))
    f32 = jnp.float32

    def w(shape, fan_in):
        return jax.random.normal(next(ks), shape, f32) * (1.0 / jnp.sqrt(fan_in))

    def b(shape):
        return jax.random.normal(next(ks), shape, f32) * 0.02

    L, D, FF, K = num_layers, d_model, dim_ff, k_bins
    p = {
        "W_emb": w((input_dim, D), input_dim), "b_emb": b((1, D)),
        # per-layer stacked params (leading axis = layer)
        "Wv": w((L, D, D), D),  "bv": b((L, 1, D)),
        "Wo": w((L, D, D), D),  "bo": b((L, 1, D)),
        "g1": jnp.ones((L, 1, D), f32),  "bt1": jnp.zeros((L, 1, D), f32),
        "W1": w((L, D, FF), D), "b1": b((L, 1, FF)),
        "W2": w((L, FF, D), FF), "b2": b((L, 1, D)),
        "g2": jnp.ones((L, 1, D), f32),  "bt2": jnp.zeros((L, 1, D), f32),
        # head
        "gh": jnp.ones((1, D), f32), "bh": jnp.zeros((1, D), f32),
        "Wh1": w((D, D // 2), D), "bh1": b((1, D // 2)),
        "Wh2": w((D // 2, K), D // 2), "bh2": b((1, K)),
    }
    return p


# ----------------------------------- main ------------------------------------

if __name__ == "__main__":
    # Small shapes consistent with the module's forward.
    batch = 8
    input_dim = 16
    d_model = 32
    nhead = 4          # does not change the result for seq_len == 1 (see header note)
    num_layers = 2
    dim_feedforward = 64
    k_bins = 10

    key = jax.random.PRNGKey(0)
    kx, kp = jax.random.split(key)
    x = jax.random.normal(kx, (batch, input_dim), jnp.float32)
    params = init_params(kp, input_dim, d_model, dim_feedforward, k_bins, num_layers)

    probs = survival_transformer_forward(x, params, num_layers)
    probs = jax.block_until_ready(probs)

    # sanity: softmax rows sum to 1 and are finite
    assert probs.shape == (batch, k_bins)
    assert bool(jnp.all(jnp.isfinite(probs)))
    assert bool(jnp.all(jnp.abs(jnp.sum(probs, axis=1) - 1.0) < 2e-3))

    print("KERNEL_OK")
</pallas_src>

<mosaic_0001>
module attributes {stable_mosaic.version = 11 : i64} {
  func.func @survival_transformer_kernel(%arg0: i32, %arg1: memref<16x16xf32, #tpu.memory_space<vmem>>, %arg2: memref<16x128xbf16, #tpu.memory_space<vmem>>, %arg3: memref<1x128xf32, #tpu.memory_space<vmem>>, %arg4: memref<2x128x128xbf16, #tpu.memory_space<vmem>>, %arg5: memref<2x1x128xf32, #tpu.memory_space<vmem>>, %arg6: memref<2x128x128xbf16, #tpu.memory_space<vmem>>, %arg7: memref<2x1x128xf32, #tpu.memory_space<vmem>>, %arg8: memref<2x1x128xf32, #tpu.memory_space<vmem>>, %arg9: memref<2x1x128xf32, #tpu.memory_space<vmem>>, %arg10: memref<2x128x128xbf16, #tpu.memory_space<vmem>>, %arg11: memref<2x1x128xf32, #tpu.memory_space<vmem>>, %arg12: memref<2x128x128xbf16, #tpu.memory_space<vmem>>, %arg13: memref<2x1x128xf32, #tpu.memory_space<vmem>>, %arg14: memref<2x1x128xf32, #tpu.memory_space<vmem>>, %arg15: memref<2x1x128xf32, #tpu.memory_space<vmem>>, %arg16: memref<1x128xf32, #tpu.memory_space<vmem>>, %arg17: memref<1x128xf32, #tpu.memory_space<vmem>>, %arg18: memref<128x128xbf16, #tpu.memory_space<vmem>>, %arg19: memref<1x128xf32, #tpu.memory_space<vmem>>, %arg20: memref<128x128xbf16, #tpu.memory_space<vmem>>, %arg21: memref<1x128xf32, #tpu.memory_space<vmem>>, %arg22: memref<16x128xf32, #tpu.memory_space<vmem>>) attributes {dimension_semantics = [#tpu.dimension_semantics<parallel>], iteration_bounds = array<i64: 1>, scalar_prefetch = 0 : i64, scratch_operands = 0 : i64, tpu.core_type = #tpu.core_type<tc>, window_params = [{transform_indices = @transform_0, window_bounds = array<i64: 16, 16>}, {pipeline_mode = #tpu.pipeline_mode<synchronous>, transform_indices = @transform_1, window_bounds = array<i64: 16, 128>}, {pipeline_mode = #tpu.pipeline_mode<synchronous>, transform_indices = @transform_2, window_bounds = array<i64: 1, 128>}, {pipeline_mode = #tpu.pipeline_mode<synchronous>, transform_indices = @transform_3, window_bounds = array<i64: 2, 128, 128>}, {pipeline_mode = #tpu.pipeline_mode<synchronous>, transform_indices = @transform_4, window_bounds = array<i64: 2, 1, 128>}, {pipeline_mode = #tpu.pipeline_mode<synchronous>, transform_indices = @transform_5, window_bounds = array<i64: 2, 128, 128>}, {pipeline_mode = #tpu.pipeline_mode<synchronous>, transform_indices = @transform_6, window_bounds = array<i64: 2, 1, 128>}, {pipeline_mode = #tpu.pipeline_mode<synchronous>, transform_indices = @transform_7, window_bounds = array<i64: 2, 1, 128>}, {pipeline_mode = #tpu.pipeline_mode<synchronous>, transform_indices = @transform_8, window_bounds = array<i64: 2, 1, 128>}, {pipeline_mode = #tpu.pipeline_mode<synchronous>, transform_indices = @transform_9, window_bounds = array<i64: 2, 128, 128>}, {pipeline_mode = #tpu.pipeline_mode<synchronous>, transform_indices = @transform_10, window_bounds = array<i64: 2, 1, 128>}, {pipeline_mode = #tpu.pipeline_mode<synchronous>, transform_indices = @transform_11, window_bounds = array<i64: 2, 128, 128>}, {pipeline_mode = #tpu.pipeline_mode<synchronous>, transform_indices = @transform_12, window_bounds = array<i64: 2, 1, 128>}, {pipeline_mode = #tpu.pipeline_mode<synchronous>, transform_indices = @transform_13, window_bounds = array<i64: 2, 1, 128>}, {pipeline_mode = #tpu.pipeline_mode<synchronous>, transform_indices = @transform_14, window_bounds = array<i64: 2, 1, 128>}, {pipeline_mode = #tpu.pipeline_mode<synchronous>, transform_indices = @transform_15, window_bounds = array<i64: 1, 128>}, {pipeline_mode = #tpu.pipeline_mode<synchronous>, transform_indices = @transform_16, window_bounds = array<i64: 1, 128>}, {pipeline_mode = #tpu.pipeline_mode<synchronous>, transform_indices = @transform_17, window_bounds = array<i64: 128, 128>}, {pipeline_mode = #tpu.pipeline_mode<synchronous>, transform_indices = @transform_18, window_bounds = array<i64: 1, 128>}, {pipeline_mode = #tpu.pipeline_mode<synchronous>, transform_indices = @transform_19, window_bounds = array<i64: 128, 128>}, {pipeline_mode = #tpu.pipeline_mode<synchronous>, transform_indices = @transform_20, window_bounds = array<i64: 1, 128>}, {transform_indices = @transform_21, window_bounds = array<i64: 16, 128>}]} {
    %c0 = arith.constant 0 : index
    %c0_0 = arith.constant 0 : index
    %0 = vector.load %arg1[%c0, %c0_0] : memref<16x16xf32, #tpu.memory_space<vmem>>, vector<16x16xf32>
    %c0_1 = arith.constant 0 : index
    %c0_2 = arith.constant 0 : index
    %1 = vector.load %arg2[%c0_1, %c0_2] : memref<16x128xbf16, #tpu.memory_space<vmem>>, vector<16x128xbf16>
    %2 = arith.truncf %0 : vector<16x16xf32> to vector<16x16xbf16>
    %cst = arith.constant dense<0.000000e+00> : vector<16x128xf32>
    %3 = tpu.matmul %2, %1, %cst {dimension_numbers = #tpu.dot_dimension_numbers<[1], [0], [0], [1], [0, 0, 1, 1], [], []>} : vector<16x16xbf16>, vector<16x128xbf16>, vector<16x128xf32> -> vector<16x128xf32>
    %c0_3 = arith.constant 0 : index
    %c0_4 = arith.constant 0 : index
    %4 = vector.load %arg3[%c0_3, %c0_4] : memref<1x128xf32, #tpu.memory_space<vmem>>, vector<1x128xf32>
    %5 = vector.broadcast %4 : vector<1x128xf32> to vector<16x128xf32>
    %6 = arith.addf %3, %5 : vector<16x128xf32>
    %c0_5 = arith.constant 0 : index
    %c0_6 = arith.constant 0 : index
    %c0_7 = arith.constant 0 : index
    %7 = vector.load %arg4[%c0_5, %c0_6, %c0_7] : memref<2x128x128xbf16, #tpu.memory_space<vmem>>, vector<1x128x128xbf16>
    %8 = vector.shape_cast %7 : vector<1x128x128xbf16> to vector<128x128xbf16>
    %9 = arith.truncf %6 : vector<16x128xf32> to vector<16x128xbf16>
    %cst_8 = arith.constant dense<0.000000e+00> : vector<16x128xf32>
    %10 = tpu.matmul %9, %8, %cst_8 {dimension_numbers = #tpu.dot_dimension_numbers<[1], [0], [0], [1], [0, 0, 1, 1], [], []>} : vector<16x128xbf16>, vector<128x128xbf16>, vector<16x128xf32> -> vector<16x128xf32>
    %c0_9 = arith.constant 0 : index
    %c0_10 = arith.constant 0 : index
    %c0_11 = arith.constant 0 : index
    %11 = vector.load %arg5[%c0_9, %c0_10, %c0_11] : memref<2x1x128xf32, #tpu.memory_space<vmem>>, vector<1x1x128xf32>
    %12 = vector.shape_cast %11 : vector<1x1x128xf32> to vector<1x128xf32>
    %13 = vector.broadcast %12 : vector<1x128xf32> to vector<16x128xf32>
    %14 = arith.addf %10, %13 : vector<16x128xf32>
    %c0_12 = arith.constant 0 : index
    %c0_13 = arith.constant 0 : index
    %c0_14 = arith.constant 0 : index
    %15 = vector.load %arg6[%c0_12, %c0_13, %c0_14] : memref<2x128x128xbf16, #tpu.memory_space<vmem>>, vector<1x128x128xbf16>
    %16 = vector.shape_cast %15 : vector<1x128x128xbf16> to vector<128x128xbf16>
    %17 = arith.truncf %14 : vector<16x128xf32> to vector<16x128xbf16>
    %cst_15 = arith.constant dense<0.000000e+00> : vector<16x128xf32>
    %18 = tpu.matmul %17, %16, %cst_15 {dimension_numbers = #tpu.dot_dimension_numbers<[1], [0], [0], [1], [0, 0, 1, 1], [], []>} : vector<16x128xbf16>, vector<128x128xbf16>, vector<16x128xf32> -> vector<16x128xf32>
    %c0_16 = arith.constant 0 : index
    %c0_17 = arith.constant 0 : index
    %c0_18 = arith.constant 0 : index
    %19 = vector.load %arg7[%c0_16, %c0_17, %c0_18] : memref<2x1x128xf32, #tpu.memory_space<vmem>>, vector<1x1x128xf32>
    %20 = vector.shape_cast %19 : vector<1x1x128xf32> to vector<1x128xf32>
    %21 = vector.broadcast %20 : vector<1x128xf32> to vector<16x128xf32>
    %22 = arith.addf %18, %21 : vector<16x128xf32>
    %23 = arith.addf %6, %22 : vector<16x128xf32>
    %c0_19 = arith.constant 0 : index
    %c0_20 = arith.constant 0 : index
    %c0_21 = arith.constant 0 : index
    %24 = vector.load %arg8[%c0_19, %c0_20, %c0_21] : memref<2x1x128xf32, #tpu.memory_space<vmem>>, vector<1x1x128xf32>
    %25 = vector.shape_cast %24 : vector<1x1x128xf32> to vector<1x128xf32>
    %c0_22 = arith.constant 0 : index
    %c0_23 = arith.constant 0 : index
    %c0_24 = arith.constant 0 : index
    %26 = vector.load %arg9[%c0_22, %c0_23, %c0_24] : memref<2x1x128xf32, #tpu.memory_space<vmem>>, vector<1x1x128xf32>
    %27 = vector.shape_cast %26 : vector<1x1x128xf32> to vector<1x128xf32>
    %cst_25 = arith.constant dense<0.000000e+00> : vector<16xf32>
    %28 = vector.multi_reduction <add>, %23, %cst_25 [1] : vector<16x128xf32> to vector<16xf32>
    %29 = vector.shape_cast %28 : vector<16xf32> to vector<16x1xf32>
    %30 = arith.mulf %23, %23 : vector<16x128xf32>
    %cst_26 = arith.constant dense<0.000000e+00> : vector<16xf32>
    %31 = vector.multi_reduction <add>, %30, %cst_26 [1] : vector<16x128xf32> to vector<16xf32>
    %32 = vector.shape_cast %31 : vector<16xf32> to vector<16x1xf32>
    %cst_27 = arith.constant 3.125000e-02 : f32
    %33 = vector.broadcast %cst_27 : f32 to vector<16x1xf32>
    %34 = arith.mulf %29, %33 : vector<16x1xf32>
    %cst_28 = arith.constant 3.125000e-02 : f32
    %35 = vector.broadcast %cst_28 : f32 to vector<16x1xf32>
    %36 = arith.mulf %32, %35 : vector<16x1xf32>
    %37 = arith.mulf %34, %34 : vector<16x1xf32>
    %38 = arith.subf %36, %37 : vector<16x1xf32>
    %cst_29 = arith.constant 9.99999974E-6 : f32
    %39 = vector.broadcast %cst_29 : f32 to vector<16x1xf32>
    %40 = arith.addf %38, %39 : vector<16x1xf32>
    %41 = math.rsqrt %40 : vector<16x1xf32>
    %42 = vector.broadcast %34 : vector<16x1xf32> to vector<16x128xf32>
    %43 = arith.subf %23, %42 : vector<16x128xf32>
    %44 = vector.broadcast %41 : vector<16x1xf32> to vector<16x128xf32>
    %45 = arith.mulf %43, %44 : vector<16x128xf32>
    %46 = vector.broadcast %25 : vector<1x128xf32> to vector<16x128xf32>
    %47 = arith.mulf %45, %46 : vector<16x128xf32>
    %48 = vector.broadcast %27 : vector<1x128xf32> to vector<16x128xf32>
    %49 = arith.addf %47, %48 : vector<16x128xf32>
    %c0_30 = arith.constant 0 : index
    %c0_31 = arith.constant 0 : index
    %c0_32 = arith.constant 0 : index
    %50 = vector.load %arg10[%c0_30, %c0_31, %c0_32] : memref<2x128x128xbf16, #tpu.memory_space<vmem>>, vector<1x128x128xbf16>
    %51 = vector.shape_cast %50 : vector<1x128x128xbf16> to vector<128x128xbf16>
    %52 = arith.truncf %49 : vector<16x128xf32> to vector<16x128xbf16>
    %cst_33 = arith.constant dense<0.000000e+00> : vector<16x128xf32>
    %53 = tpu.matmul %52, %51, %cst_33 {dimension_numbers = #tpu.dot_dimension_numbers<[1], [0], [0], [1], [0, 0, 1, 1], [], []>} : vector<16x128xbf16>, vector<128x128xbf16>, vector<16x128xf32> -> vector<16x128xf32>
    %c0_34 = arith.constant 0 : index
    %c0_35 = arith.constant 0 : index
    %c0_36 = arith.constant 0 : index
    %54 = vector.load %arg11[%c0_34, %c0_35, %c0_36] : memref<2x1x128xf32, #tpu.memory_space<vmem>>, vector<1x1x128xf32>
    %55 = vector.shape_cast %54 : vector<1x1x128xf32> to vector<1x128xf32>
    %56 = vector.broadcast %55 : vector<1x128xf32> to vector<16x128xf32>
    %57 = arith.addf %53, %56 : vector<16x128xf32>
    %cst_37 = arith.constant 5.000000e-01 : f32
    %58 = vector.broadcast %cst_37 : f32 to vector<16x128xf32>
    %59 = arith.mulf %58, %57 : vector<16x128xf32>
    %cst_38 = arith.constant 0.707106769 : f32
    %60 = vector.broadcast %cst_38 : f32 to vector<16x128xf32>
    %61 = arith.mulf %57, %60 : vector<16x128xf32>
    %62 = math.erf %61 : vector<16x128xf32>
    %cst_39 = arith.constant 1.000000e+00 : f32
    %63 = vector.broadcast %cst_39 : f32 to vector<16x128xf32>
    %64 = arith.addf %63, %62 : vector<16x128xf32>
    %65 = arith.mulf %59, %64 : vector<16x128xf32>
    %c0_40 = arith.constant 0 : index
    %c0_41 = arith.constant 0 : index
    %c0_42 = arith.constant 0 : index
    %66 = vector.load %arg12[%c0_40, %c0_41, %c0_42] : memref<2x128x128xbf16, #tpu.memory_space<vmem>>, vector<1x128x128xbf16>
    %67 = vector.shape_cast %66 : vector<1x128x128xbf16> to vector<128x128xbf16>
    %68 = arith.truncf %65 : vector<16x128xf32> to vector<16x128xbf16>
    %cst_43 = arith.constant dense<0.000000e+00> : vector<16x128xf32>
    %69 = tpu.matmul %68, %67, %cst_43 {dimension_numbers = #tpu.dot_dimension_numbers<[1], [0], [0], [1], [0, 0, 1, 1], [], []>} : vector<16x128xbf16>, vector<128x128xbf16>, vector<16x128xf32> -> vector<16x128xf32>
    %c0_44 = arith.constant 0 : index
    %c0_45 = arith.constant 0 : index
    %c0_46 = arith.constant 0 : index
    %70 = vector.load %arg13[%c0_44, %c0_45, %c0_46] : memref<2x1x128xf32, #tpu.memory_space<vmem>>, vector<1x1x128xf32>
    %71 = vector.shape_cast %70 : vector<1x1x128xf32> to vector<1x128xf32>
    %72 = vector.broadcast %71 : vector<1x128xf32> to vector<16x128xf32>
    %73 = arith.addf %69, %72 : vector<16x128xf32>
    %74 = arith.addf %49, %73 : vector<16x128xf32>
    %c0_47 = arith.constant 0 : index
    %c0_48 = arith.constant 0 : index
    %c0_49 = arith.constant 0 : index
    %75 = vector.load %arg14[%c0_47, %c0_48, %c0_49] : memref<2x1x128xf32, #tpu.memory_space<vmem>>, vector<1x1x128xf32>
    %76 = vector.shape_cast %75 : vector<1x1x128xf32> to vector<1x128xf32>
    %c0_50 = arith.constant 0 : index
    %c0_51 = arith.constant 0 : index
    %c0_52 = arith.constant 0 : index
    %77 = vector.load %arg15[%c0_50, %c0_51, %c0_52] : memref<2x1x128xf32, #tpu.memory_space<vmem>>, vector<1x1x128xf32>
    %78 = vector.shape_cast %77 : vector<1x1x128xf32> to vector<1x128xf32>
    %cst_53 = arith.constant dense<0.000000e+00> : vector<16xf32>
    %79 = vector.multi_reduction <add>, %74, %cst_53 [1] : vector<16x128xf32> to vector<16xf32>
    %80 = vector.shape_cast %79 : vector<16xf32> to vector<16x1xf32>
    %81 = arith.mulf %74, %74 : vector<16x128xf32>
    %cst_54 = arith.constant dense<0.000000e+00> : vector<16xf32>
    %82 = vector.multi_reduction <add>, %81, %cst_54 [1] : vector<16x128xf32> to vector<16xf32>
    %83 = vector.shape_cast %82 : vector<16xf32> to vector<16x1xf32>
    %cst_55 = arith.constant 3.125000e-02 : f32
    %84 = vector.broadcast %cst_55 : f32 to vector<16x1xf32>
    %85 = arith.mulf %80, %84 : vector<16x1xf32>
    %cst_56 = arith.constant 3.125000e-02 : f32
    %86 = vector.broadcast %cst_56 : f32 to vector<16x1xf32>
    %87 = arith.mulf %83, %86 : vector<16x1xf32>
    %88 = arith.mulf %85, %85 : vector<16x1xf32>
    %89 = arith.subf %87, %88 : vector<16x1xf32>
    %cst_57 = arith.constant 9.99999974E-6 : f32
    %90 = vector.broadcast %cst_57 : f32 to vector<16x1xf32>
    %91 = arith.addf %89, %90 : vector<16x1xf32>
    %92 = math.rsqrt %91 : vector<16x1xf32>
    %93 = vector.broadcast %85 : vector<16x1xf32> to vector<16x128xf32>
    %94 = arith.subf %74, %93 : vector<16x128xf32>
    %95 = vector.broadcast %92 : vector<16x1xf32> to vector<16x128xf32>
    %96 = arith.mulf %94, %95 : vector<16x128xf32>
    %97 = vector.broadcast %76 : vector<1x128xf32> to vector<16x128xf32>
    %98 = arith.mulf %96, %97 : vector<16x128xf32>
    %99 = vector.broadcast %78 : vector<1x128xf32> to vector<16x128xf32>
    %100 = arith.addf %98, %99 : vector<16x128xf32>
    %c1 = arith.constant 1 : index
    %c0_58 = arith.constant 0 : index
    %c0_59 = arith.constant 0 : index
    %101 = vector.load %arg4[%c1, %c0_58, %c0_59] : memref<2x128x128xbf16, #tpu.memory_space<vmem>>, vector<1x128x128xbf16>
    %102 = vector.shape_cast %101 : vector<1x128x128xbf16> to vector<128x128xbf16>
    %103 = arith.truncf %100 : vector<16x128xf32> to vector<16x128xbf16>
    %cst_60 = arith.constant dense<0.000000e+00> : vector<16x128xf32>
    %104 = tpu.matmul %103, %102, %cst_60 {dimension_numbers = #tpu.dot_dimension_numbers<[1], [0], [0], [1], [0, 0, 1, 1], [], []>} : vector<16x128xbf16>, vector<128x128xbf16>, vector<16x128xf32> -> vector<16x128xf32>
    %c1_61 = arith.constant 1 : index
    %c0_62 = arith.constant 0 : index
    %c0_63 = arith.constant 0 : index
    %105 = vector.load %arg5[%c1_61, %c0_62, %c0_63] : memref<2x1x128xf32, #tpu.memory_space<vmem>>, vector<1x1x128xf32>
    %106 = vector.shape_cast %105 : vector<1x1x128xf32> to vector<1x128xf32>
    %107 = vector.broadcast %106 : vector<1x128xf32> to vector<16x128xf32>
    %108 = arith.addf %104, %107 : vector<16x128xf32>
    %c1_64 = arith.constant 1 : index
    %c0_65 = arith.constant 0 : index
    %c0_66 = arith.constant 0 : index
    %109 = vector.load %arg6[%c1_64, %c0_65, %c0_66] : memref<2x128x128xbf16, #tpu.memory_space<vmem>>, vector<1x128x128xbf16>
    %110 = vector.shape_cast %109 : vector<1x128x128xbf16> to vector<128x128xbf16>
    %111 = arith.truncf %108 : vector<16x128xf32> to vector<16x128xbf16>
    %cst_67 = arith.constant dense<0.000000e+00> : vector<16x128xf32>
    %112 = tpu.matmul %111, %110, %cst_67 {dimension_numbers = #tpu.dot_dimension_numbers<[1], [0], [0], [1], [0, 0, 1, 1], [], []>} : vector<16x128xbf16>, vector<128x128xbf16>, vector<16x128xf32> -> vector<16x128xf32>
    %c1_68 = arith.constant 1 : index
    %c0_69 = arith.constant 0 : index
    %c0_70 = arith.constant 0 : index
    %113 = vector.load %arg7[%c1_68, %c0_69, %c0_70] : memref<2x1x128xf32, #tpu.memory_space<vmem>>, vector<1x1x128xf32>
    %114 = vector.shape_cast %113 : vector<1x1x128xf32> to vector<1x128xf32>
    %115 = vector.broadcast %114 : vector<1x128xf32> to vector<16x128xf32>
    %116 = arith.addf %112, %115 : vector<16x128xf32>
    %117 = arith.addf %100, %116 : vector<16x128xf32>
    %c1_71 = arith.constant 1 : index
    %c0_72 = arith.constant 0 : index
    %c0_73 = arith.constant 0 : index
    %118 = vector.load %arg8[%c1_71, %c0_72, %c0_73] : memref<2x1x128xf32, #tpu.memory_space<vmem>>, vector<1x1x128xf32>
    %119 = vector.shape_cast %118 : vector<1x1x128xf32> to vector<1x128xf32>
    %c1_74 = arith.constant 1 : index
    %c0_75 = arith.constant 0 : index
    %c0_76 = arith.constant 0 : index
    %120 = vector.load %arg9[%c1_74, %c0_75, %c0_76] : memref<2x1x128xf32, #tpu.memory_space<vmem>>, vector<1x1x128xf32>
    %121 = vector.shape_cast %120 : vector<1x1x128xf32> to vector<1x128xf32>
    %cst_77 = arith.constant dense<0.000000e+00> : vector<16xf32>
    %122 = vector.multi_reduction <add>, %117, %cst_77 [1] : vector<16x128xf32> to vector<16xf32>
    %123 = vector.shape_cast %122 : vector<16xf32> to vector<16x1xf32>
    %124 = arith.mulf %117, %117 : vector<16x128xf32>
    %cst_78 = arith.constant dense<0.000000e+00> : vector<16xf32>
    %125 = vector.multi_reduction <add>, %124, %cst_78 [1] : vector<16x128xf32> to vector<16xf32>
    %126 = vector.shape_cast %125 : vector<16xf32> to vector<16x1xf32>
    %cst_79 = arith.constant 3.125000e-02 : f32
    %127 = vector.broadcast %cst_79 : f32 to vector<16x1xf32>
    %128 = arith.mulf %123, %127 : vector<16x1xf32>
    %cst_80 = arith.constant 3.125000e-02 : f32
    %129 = vector.broadcast %cst_80 : f32 to vector<16x1xf32>
    %130 = arith.mulf %126, %129 : vector<16x1xf32>
    %131 = arith.mulf %128, %128 : vector<16x1xf32>
    %132 = arith.subf %130, %131 : vector<16x1xf32>
    %cst_81 = arith.constant 9.99999974E-6 : f32
    %133 = vector.broadcast %cst_81 : f32 to vector<16x1xf32>
    %134 = arith.addf %132, %133 : vector<16x1xf32>
    %135 = math.rsqrt %134 : vector<16x1xf32>
    %136 = vector.broadcast %128 : vector<16x1xf32> to vector<16x128xf32>
    %137 = arith.subf %117, %136 : vector<16x128xf32>
    %138 = vector.broadcast %135 : vector<16x1xf32> to vector<16x128xf32>
    %139 = arith.mulf %137, %138 : vector<16x128xf32>
    %140 = vector.broadcast %119 : vector<1x128xf32> to vector<16x128xf32>
    %141 = arith.mulf %139, %140 : vector<16x128xf32>
    %142 = vector.broadcast %121 : vector<1x128xf32> to vector<16x128xf32>
    %143 = arith.addf %141, %142 : vector<16x128xf32>
    %c1_82 = arith.constant 1 : index
    %c0_83 = arith.constant 0 : index
    %c0_84 = arith.constant 0 : index
    %144 = vector.load %arg10[%c1_82, %c0_83, %c0_84] : memref<2x128x128xbf16, #tpu.memory_space<vmem>>, vector<1x128x128xbf16>
    %145 = vector.shape_cast %144 : vector<1x128x128xbf16> to vector<128x128xbf16>
    %146 = arith.truncf %143 : vector<16x128xf32> to vector<16x128xbf16>
    %cst_85 = arith.constant dense<0.000000e+00> : vector<16x128xf32>
    %147 = tpu.matmul %146, %145, %cst_85 {dimension_numbers = #tpu.dot_dimension_numbers<[1], [0], [0], [1], [0, 0, 1, 1], [], []>} : vector<16x128xbf16>, vector<128x128xbf16>, vector<16x128xf32> -> vector<16x128xf32>
    %c1_86 = arith.constant 1 : index
    %c0_87 = arith.constant 0 : index
    %c0_88 = arith.constant 0 : index
    %148 = vector.load %arg11[%c1_86, %c0_87, %c0_88] : memref<2x1x128xf32, #tpu.memory_space<vmem>>, vector<1x1x128xf32>
    %149 = vector.shape_cast %148 : vector<1x1x128xf32> to vector<1x128xf32>
    %150 = vector.broadcast %149 : vector<1x128xf32> to vector<16x128xf32>
    %151 = arith.addf %147, %150 : vector<16x128xf32>
    %cst_89 = arith.constant 5.000000e-01 : f32
    %152 = vector.broadcast %cst_89 : f32 to vector<16x128xf32>
    %153 = arith.mulf %152, %151 : vector<16x128xf32>
    %cst_90 = arith.constant 0.707106769 : f32
    %154 = vector.broadcast %cst_90 : f32 to vector<16x128xf32>
    %155 = arith.mulf %151, %154 : vector<16x128xf32>
    %156 = math.erf %155 : vector<16x128xf32>
    %cst_91 = arith.constant 1.000000e+00 : f32
    %157 = vector.broadcast %cst_91 : f32 to vector<16x128xf32>
    %158 = arith.addf %157, %156 : vector<16x128xf32>
    %159 = arith.mulf %153, %158 : vector<16x128xf32>
    %c1_92 = arith.constant 1 : index
    %c0_93 = arith.constant 0 : index
    %c0_94 = arith.constant 0 : index
    %160 = vector.load %arg12[%c1_92, %c0_93, %c0_94] : memref<2x128x128xbf16, #tpu.memory_space<vmem>>, vector<1x128x128xbf16>
    %161 = vector.shape_cast %160 : vector<1x128x128xbf16> to vector<128x128xbf16>
    %162 = arith.truncf %159 : vector<16x128xf32> to vector<16x128xbf16>
    %cst_95 = arith.constant dense<0.000000e+00> : vector<16x128xf32>
    %163 = tpu.matmul %162, %161, %cst_95 {dimension_numbers = #tpu.dot_dimension_numbers<[1], [0], [0], [1], [0, 0, 1, 1], [], []>} : vector<16x128xbf16>, vector<128x128xbf16>, vector<16x128xf32> -> vector<16x128xf32>
    %c1_96 = arith.constant 1 : index
    %c0_97 = arith.constant 0 : index
    %c0_98 = arith.constant 0 : index
    %164 = vector.load %arg13[%c1_96, %c0_97, %c0_98] : memref<2x1x128xf32, #tpu.memory_space<vmem>>, vector<1x1x128xf32>
    %165 = vector.shape_cast %164 : vector<1x1x128xf32> to vector<1x128xf32>
    %166 = vector.broadcast %165 : vector<1x128xf32> to vector<16x128xf32>
    %167 = arith.addf %163, %166 : vector<16x128xf32>
    %168 = arith.addf %143, %167 : vector<16x128xf32>
    %c1_99 = arith.constant 1 : index
    %c0_100 = arith.constant 0 : index
    %c0_101 = arith.constant 0 : index
    %169 = vector.load %arg14[%c1_99, %c0_100, %c0_101] : memref<2x1x128xf32, #tpu.memory_space<vmem>>, vector<1x1x128xf32>
    %170 = vector.shape_cast %169 : vector<1x1x128xf32> to vector<1x128xf32>
    %c1_102 = arith.constant 1 : index
    %c0_103 = arith.constant 0 : index
    %c0_104 = arith.constant 0 : index
    %171 = vector.load %arg15[%c1_102, %c0_103, %c0_104] : memref<2x1x128xf32, #tpu.memory_space<vmem>>, vector<1x1x128xf32>
    %172 = vector.shape_cast %171 : vector<1x1x128xf32> to vector<1x128xf32>
    %cst_105 = arith.constant dense<0.000000e+00> : vector<16xf32>
    %173 = vector.multi_reduction <add>, %168, %cst_105 [1] : vector<16x128xf32> to vector<16xf32>
    %174 = vector.shape_cast %173 : vector<16xf32> to vector<16x1xf32>
    %175 = arith.mulf %168, %168 : vector<16x128xf32>
    %cst_106 = arith.constant dense<0.000000e+00> : vector<16xf32>
    %176 = vector.multi_reduction <add>, %175, %cst_106 [1] : vector<16x128xf32> to vector<16xf32>
    %177 = vector.shape_cast %176 : vector<16xf32> to vector<16x1xf32>
    %cst_107 = arith.constant 3.125000e-02 : f32
    %178 = vector.broadcast %cst_107 : f32 to vector<16x1xf32>
    %179 = arith.mulf %174, %178 : vector<16x1xf32>
    %cst_108 = arith.constant 3.125000e-02 : f32
    %180 = vector.broadcast %cst_108 : f32 to vector<16x1xf32>
    %181 = arith.mulf %177, %180 : vector<16x1xf32>
    %182 = arith.mulf %179, %179 : vector<16x1xf32>
    %183 = arith.subf %181, %182 : vector<16x1xf32>
    %cst_109 = arith.constant 9.99999974E-6 : f32
    %184 = vector.broadcast %cst_109 : f32 to vector<16x1xf32>
    %185 = arith.addf %183, %184 : vector<16x1xf32>
    %186 = math.rsqrt %185 : vector<16x1xf32>
    %187 = vector.broadcast %179 : vector<16x1xf32> to vector<16x128xf32>
    %188 = arith.subf %168, %187 : vector<16x128xf32>
    %189 = vector.broadcast %186 : vector<16x1xf32> to vector<16x128xf32>
    %190 = arith.mulf %188, %189 : vector<16x128xf32>
    %191 = vector.broadcast %170 : vector<1x128xf32> to vector<16x128xf32>
    %192 = arith.mulf %190, %191 : vector<16x128xf32>
    %193 = vector.broadcast %172 : vector<1x128xf32> to vector<16x128xf32>
    %194 = arith.addf %192, %193 : vector<16x128xf32>
    %c0_110 = arith.constant 0 : index
    %c0_111 = arith.constant 0 : index
    %195 = vector.load %arg16[%c0_110, %c0_111] : memref<1x128xf32, #tpu.memory_space<vmem>>, vector<1x128xf32>
    %c0_112 = arith.constant 0 : index
    %c0_113 = arith.constant 0 : index
    %196 = vector.load %arg17[%c0_112, %c0_113] : memref<1x128xf32, #tpu.memory_space<vmem>>, vector<1x128xf32>
    %cst_114 = arith.constant dense<0.000000e+00> : vector<16xf32>
    %197 = vector.multi_reduction <add>, %194, %cst_114 [1] : vector<16x128xf32> to vector<16xf32>
    %198 = vector.shape_cast %197 : vector<16xf32> to vector<16x1xf32>
    %199 = arith.mulf %194, %194 : vector<16x128xf32>
    %cst_115 = arith.constant dense<0.000000e+00> : vector<16xf32>
    %200 = vector.multi_reduction <add>, %199, %cst_115 [1] : vector<16x128xf32> to vector<16xf32>
    %201 = vector.shape_cast %200 : vector<16xf32> to vector<16x1xf32>
    %cst_116 = arith.constant 3.125000e-02 : f32
    %202 = vector.broadcast %cst_116 : f32 to vector<16x1xf32>
    %203 = arith.mulf %198, %202 : vector<16x1xf32>
    %cst_117 = arith.constant 3.125000e-02 : f32
    %204 = vector.broadcast %cst_117 : f32 to vector<16x1xf32>
    %205 = arith.mulf %201, %204 : vector<16x1xf32>
    %206 = arith.mulf %203, %203 : vector<16x1xf32>
    %207 = arith.subf %205, %206 : vector<16x1xf32>
    %cst_118 = arith.constant 9.99999974E-6 : f32
    %208 = vector.broadcast %cst_118 : f32 to vector<16x1xf32>
    %209 = arith.addf %207, %208 : vector<16x1xf32>
    %210 = math.rsqrt %209 : vector<16x1xf32>
    %211 = vector.broadcast %203 : vector<16x1xf32> to vector<16x128xf32>
    %212 = arith.subf %194, %211 : vector<16x128xf32>
    %213 = vector.broadcast %210 : vector<16x1xf32> to vector<16x128xf32>
    %214 = arith.mulf %212, %213 : vector<16x128xf32>
    %215 = vector.broadcast %195 : vector<1x128xf32> to vector<16x128xf32>
    %216 = arith.mulf %214, %215 : vector<16x128xf32>
    %217 = vector.broadcast %196 : vector<1x128xf32> to vector<16x128xf32>
    %218 = arith.addf %216, %217 : vector<16x128xf32>
    %c0_119 = arith.constant 0 : index
    %c0_120 = arith.constant 0 : index
    %219 = vector.load %arg18[%c0_119, %c0_120] : memref<128x128xbf16, #tpu.memory_space<vmem>>, vector<128x128xbf16>
    %220 = arith.truncf %218 : vector<16x128xf32> to vector<16x128xbf16>
    %cst_121 = arith.constant dense<0.000000e+00> : vector<16x128xf32>
    %221 = tpu.matmul %220, %219, %cst_121 {dimension_numbers = #tpu.dot_dimension_numbers<[1], [0], [0], [1], [0, 0, 1, 1], [], []>} : vector<16x128xbf16>, vector<128x128xbf16>, vector<16x128xf32> -> vector<16x128xf32>
    %c0_122 = arith.constant 0 : index
    %c0_123 = arith.constant 0 : index
    %222 = vector.load %arg19[%c0_122, %c0_123] : memref<1x128xf32, #tpu.memory_space<vmem>>, vector<1x128xf32>
    %223 = vector.broadcast %222 : vector<1x128xf32> to vector<16x128xf32>
    %224 = arith.addf %221, %223 : vector<16x128xf32>
    %cst_124 = arith.constant 5.000000e-01 : f32
    %225 = vector.broadcast %cst_124 : f32 to vector<16x128xf32>
    %226 = arith.mulf %225, %224 : vector<16x128xf32>
    %cst_125 = arith.constant 0.707106769 : f32
    %227 = vector.broadcast %cst_125 : f32 to vector<16x128xf32>
    %228 = arith.mulf %224, %227 : vector<16x128xf32>
    %229 = math.erf %228 : vector<16x128xf32>
    %cst_126 = arith.constant 1.000000e+00 : f32
    %230 = vector.broadcast %cst_126 : f32 to vector<16x128xf32>
    %231 = arith.addf %230, %229 : vector<16x128xf32>
    %232 = arith.mulf %226, %231 : vector<16x128xf32>
    %c0_127 = arith.constant 0 : index
    %c0_128 = arith.constant 0 : index
    %233 = vector.load %arg20[%c0_127, %c0_128] : memref<128x128xbf16, #tpu.memory_space<vmem>>, vector<128x128xbf16>
    %234 = arith.truncf %232 : vector<16x128xf32> to vector<16x128xbf16>
    %cst_129 = arith.constant dense<0.000000e+00> : vector<16x128xf32>
    %235 = tpu.matmul %234, %233, %cst_129 {dimension_numbers = #tpu.dot_dimension_numbers<[1], [0], [0], [1], [0, 0, 1, 1], [], []>} : vector<16x128xbf16>, vector<128x128xbf16>, vector<16x128xf32> -> vector<16x128xf32>
    %c0_130 = arith.constant 0 : index
    %c0_131 = arith.constant 0 : index
    %236 = vector.load %arg21[%c0_130, %c0_131] : memref<1x128xf32, #tpu.memory_space<vmem>>, vector<1x128xf32>
    %237 = vector.broadcast %236 : vector<1x128xf32> to vector<16x128xf32>
    %238 = arith.addf %235, %237 : vector<16x128xf32>
    %cst_132 = arith.constant dense<0xFF800000> : vector<16xf32>
    %239 = vector.multi_reduction <maximumf>, %238, %cst_132 [1] : vector<16x128xf32> to vector<16xf32>
    %240 = vector.shape_cast %239 : vector<16xf32> to vector<16x1xf32>
    %241 = vector.broadcast %240 : vector<16x1xf32> to vector<16x128xf32>
    %242 = arith.subf %238, %241 : vector<16x128xf32>
    %243 = math.exp %242 : vector<16x128xf32>
    %cst_133 = arith.constant dense<0.000000e+00> : vector<16xf32>
    %244 = vector.multi_reduction <add>, %243, %cst_133 [1] : vector<16x128xf32> to vector<16xf32>
    %245 = vector.shape_cast %244 : vector<16xf32> to vector<16x1xf32>
    %246 = tpu.reciprocal %245 {approx = true} : vector<16x1xf32> -> vector<16x1xf32>
    %247 = vector.broadcast %246 : vector<16x1xf32> to vector<16x128xf32>
    %248 = arith.mulf %243, %247 : vector<16x128xf32>
    %c0_134 = arith.constant 0 : index
    %c0_135 = arith.constant 0 : index
    %249 = vector.load %arg22[%c0_134, %c0_135] : memref<16x128xf32, #tpu.memory_space<vmem>>, vector<16x128xf32>
    tpu.vector_store %arg22[%c0_134, %c0_135], %248 {strides = array<i32>} : memref<16x128xf32, #tpu.memory_space<vmem>>, vector<16x128xf32>,
    return
  }
  func.func @transform_0(%arg0: i32) -> (i32, i32) {
    %c0_i32 = arith.constant 0 : i32
    %c0_i32_0 = arith.constant 0 : i32
    return %arg0, %c0_i32 : i32, i32
  }
  func.func @transform_1(%arg0: i32) -> (i32, i32) {
    %c0_i32 = arith.constant 0 : i32
    %c0_i32_0 = arith.constant 0 : i32
    %c0_i32_1 = arith.constant 0 : i32
    return %c0_i32, %c0_i32_0 : i32, i32
  }
  func.func @transform_2(%arg0: i32) -> (i32, i32) {
    %c0_i32 = arith.constant 0 : i32
    %c0_i32_0 = arith.constant 0 : i32
    %c0_i32_1 = arith.constant 0 : i32
    return %c0_i32, %c0_i32_0 : i32, i32
  }
  func.func @transform_3(%arg0: i32) -> (i32, i32, i32) {
    %c0_i32 = arith.constant 0 : i32
    %c0_i32_0 = arith.constant 0 : i32
    %c0_i32_1 = arith.constant 0 : i32
    %c0_i32_2 = arith.constant 0 : i32
    return %c0_i32, %c0_i32_0, %c0_i32_1 : i32, i32, i32
  }
  func.func @transform_4(%arg0: i32) -> (i32, i32, i32) {
    %c0_i32 = arith.constant 0 : i32
    %c0_i32_0 = arith.constant 0 : i32
    %c0_i32_1 = arith.constant 0 : i32
    %c0_i32_2 = arith.constant 0 : i32
    return %c0_i32, %c0_i32_0, %c0_i32_1 : i32, i32, i32
  }
  func.func @transform_5(%arg0: i32) -> (i32, i32, i32) {
    %c0_i32 = arith.constant 0 : i32
    %c0_i32_0 = arith.constant 0 : i32
    %c0_i32_1 = arith.constant 0 : i32
    %c0_i32_2 = arith.constant 0 : i32
    return %c0_i32, %c0_i32_0, %c0_i32_1 : i32, i32, i32
  }
  func.func @transform_6(%arg0: i32) -> (i32, i32, i32) {
    %c0_i32 = arith.constant 0 : i32
    %c0_i32_0 = arith.constant 0 : i32
    %c0_i32_1 = arith.constant 0 : i32
    %c0_i32_2 = arith.constant 0 : i32
    return %c0_i32, %c0_i32_0, %c0_i32_1 : i32, i32, i32
  }
  func.func @transform_7(%arg0: i32) -> (i32, i32, i32) {
    %c0_i32 = arith.constant 0 : i32
    %c0_i32_0 = arith.constant 0 : i32
    %c0_i32_1 = arith.constant 0 : i32
    %c0_i32_2 = arith.constant 0 : i32
    return %c0_i32, %c0_i32_0, %c0_i32_1 : i32, i32, i32
  }
  func.func @transform_8(%arg0: i32) -> (i32, i32, i32) {
    %c0_i32 = arith.constant 0 : i32
    %c0_i32_0 = arith.constant 0 : i32
    %c0_i32_1 = arith.constant 0 : i32
    %c0_i32_2 = arith.constant 0 : i32
    return %c0_i32, %c0_i32_0, %c0_i32_1 : i32, i32, i32
  }
  func.func @transform_9(%arg0: i32) -> (i32, i32, i32) {
    %c0_i32 = arith.constant 0 : i32
    %c0_i32_0 = arith.constant 0 : i32
    %c0_i32_1 = arith.constant 0 : i32
    %c0_i32_2 = arith.constant 0 : i32
    return %c0_i32, %c0_i32_0, %c0_i32_1 : i32, i32, i32
  }
  func.func @transform_10(%arg0: i32) -> (i32, i32, i32) {
    %c0_i32 = arith.constant 0 : i32
    %c0_i32_0 = arith.constant 0 : i32
    %c0_i32_1 = arith.constant 0 : i32
    %c0_i32_2 = arith.constant 0 : i32
    return %c0_i32, %c0_i32_0, %c0_i32_1 : i32, i32, i32
  }
  func.func @transform_11(%arg0: i32) -> (i32, i32, i32) {
    %c0_i32 = arith.constant 0 : i32
    %c0_i32_0 = arith.constant 0 : i32
    %c0_i32_1 = arith.constant 0 : i32
    %c0_i32_2 = arith.constant 0 : i32
    return %c0_i32, %c0_i32_0, %c0_i32_1 : i32, i32, i32
  }
  func.func @transform_12(%arg0: i32) -> (i32, i32, i32) {
    %c0_i32 = arith.constant 0 : i32
    %c0_i32_0 = arith.constant 0 : i32
    %c0_i32_1 = arith.constant 0 : i32
    %c0_i32_2 = arith.constant 0 : i32
    return %c0_i32, %c0_i32_0, %c0_i32_1 : i32, i32, i32
  }
  func.func @transform_13(%arg0: i32) -> (i32, i32, i32) {
    %c0_i32 = arith.constant 0 : i32
    %c0_i32_0 = arith.constant 0 : i32
    %c0_i32_1 = arith.constant 0 : i32
    %c0_i32_2 = arith.constant 0 : i32
    return %c0_i32, %c0_i32_0, %c0_i32_1 : i32, i32, i32
  }
  func.func @transform_14(%arg0: i32) -> (i32, i32, i32) {
    %c0_i32 = arith.constant 0 : i32
    %c0_i32_0 = arith.constant 0 : i32
    %c0_i32_1 = arith.constant 0 : i32
    %c0_i32_2 = arith.constant 0 : i32
    return %c0_i32, %c0_i32_0, %c0_i32_1 : i32, i32, i32
  }
  func.func @transform_15(%arg0: i32) -> (i32, i32) {
    %c0_i32 = arith.constant 0 : i32
    %c0_i32_0 = arith.constant 0 : i32
    %c0_i32_1 = arith.constant 0 : i32
    return %c0_i32, %c0_i32_0 : i32, i32
  }
  func.func @transform_16(%arg0: i32) -> (i32, i32) {
    %c0_i32 = arith.constant 0 : i32
    %c0_i32_0 = arith.constant 0 : i32
    %c0_i32_1 = arith.constant 0 : i32
    return %c0_i32, %c0_i32_0 : i32, i32
  }
  func.func @transform_17(%arg0: i32) -> (i32, i32) {
    %c0_i32 = arith.constant 0 : i32
    %c0_i32_0 = arith.constant 0 : i32
    %c0_i32_1 = arith.constant 0 : i32
    return %c0_i32, %c0_i32_0 : i32, i32
  }
  func.func @transform_18(%arg0: i32) -> (i32, i32) {
    %c0_i32 = arith.constant 0 : i32
    %c0_i32_0 = arith.constant 0 : i32
    %c0_i32_1 = arith.constant 0 : i32
    return %c0_i32, %c0_i32_0 : i32, i32
  }
  func.func @transform_19(%arg0: i32) -> (i32, i32) {
    %c0_i32 = arith.constant 0 : i32
    %c0_i32_0 = arith.constant 0 : i32
    %c0_i32_1 = arith.constant 0 : i32
    return %c0_i32, %c0_i32_0 : i32, i32
  }
  func.func @transform_20(%arg0: i32) -> (i32, i32) {
    %c0_i32 = arith.constant 0 : i32
    %c0_i32_0 = arith.constant 0 : i32
    %c0_i32_1 = arith.constant 0 : i32
    return %c0_i32, %c0_i32_0 : i32, i32
  }
  func.func @transform_21(%arg0: i32) -> (i32, i32) {
    %c0_i32 = arith.constant 0 : i32
    %c0_i32_0 = arith.constant 0 : i32
    return %arg0, %c0_i32 : i32, i32
  }
}

</mosaic_0001>

<llo_original>
// kernel: tpu_custom_call.1
$region0: #{tpu_custom_call.1}
  #allocation0 [shape = 'u32[]', space=smem, size = 0x4, offset = 0x4, fixed_abs, tag = 'smem constant byte address 0x4 - core index']
  #allocation1 [shape = 'u32[144,128]{1,0:T(1,128)}', space=vmem, size = 0x12000, scoped, tag = 'internal scratch']
  %s0 = inlined_call_operand.hbm [shape: f32[16,16], index: 0, kind: input, shape index: {}]
  %s1 = inlined_call_operand.hbm [shape: bf16[16,128], index: 1, kind: input, shape index: {}]
  %s2 = inlined_call_operand.hbm [shape: f32[1,128], index: 2, kind: input, shape index: {}]
  %s3 = inlined_call_operand.hbm [shape: bf16[2,128,128], index: 3, kind: input, shape index: {}]
  %s4 = inlined_call_operand.hbm [shape: f32[2,1,128], index: 4, kind: input, shape index: {}]
  %s5 = inlined_call_operand.hbm [shape: bf16[2,128,128], index: 5, kind: input, shape index: {}]
  %s6 = inlined_call_operand.hbm [shape: f32[2,1,128], index: 6, kind: input, shape index: {}]
  %s7 = inlined_call_operand.hbm [shape: f32[2,1,128], index: 7, kind: input, shape index: {}]
  %s8 = inlined_call_operand.hbm [shape: f32[2,1,128], index: 8, kind: input, shape index: {}]
  %s9 = inlined_call_operand.hbm [shape: bf16[2,128,128], index: 9, kind: input, shape index: {}]
  %s10 = inlined_call_operand.hbm [shape: f32[2,1,128], index: 10, kind: input, shape index: {}]
  %s11 = inlined_call_operand.hbm [shape: bf16[2,128,128], index: 11, kind: input, shape index: {}]
  %s12 = inlined_call_operand.hbm [shape: f32[2,1,128], index: 12, kind: input, shape index: {}]
  %s13 = inlined_call_operand.hbm [shape: f32[2,1,128], index: 13, kind: input, shape index: {}]
  %s14 = inlined_call_operand.hbm [shape: f32[2,1,128], index: 14, kind: input, shape index: {}]
  %s15 = inlined_call_operand.hbm [shape: f32[1,128], index: 15, kind: input, shape index: {}]
  %s16 = inlined_call_operand.hbm [shape: f32[1,128], index: 16, kind: input, shape index: {}]
  %s17 = inlined_call_operand.vmem [shape: bf16[128,128], index: 17, kind: input, shape index: {}]
  %s18 = inlined_call_operand.vmem [shape: f32[1,128], index: 18, kind: input, shape index: {}]
  %s19 = inlined_call_operand.hbm [shape: bf16[128,128], index: 19, kind: input, shape index: {}]
  %s20 = inlined_call_operand.vmem [shape: f32[1,128], index: 20, kind: input, shape index: {}]
  %s21 = inlined_call_operand.hbm [shape: f32[16,128], index: 21, kind: output, shape index: {}]
  %s22 = sld [smem:[#allocation0]]
  $region166: #{tpu_custom_call.1} parent=0
    _
  %s24 = ssub.s32 1, %s22
  %s25 = scalar_select 0, %s24, %s22
  $region1: #{tpu_custom_call.1} parent=0
    #allocation2 [shape = 'u8[8192]{0}', space=vmem, size = 0x2000, scoped, tag = 'input window, operand 0, single buffered']
    #allocation3 [shape = 's32[1]{0}', space=sflag, size = 0x4, scoped, tag = 'scoped memory for tpu_custom_call.1']
    #allocation4 [shape = 's32[1]{0}', space=sflag, size = 0x4, scoped, tag = 'scoped memory for tpu_custom_call.1']
    #allocation5 [shape = 'u8[4096]{0}', space=vmem, size = 0x1000, scoped, tag = 'input window, operand 1, single buffered']
    #allocation6 [shape = 's32[1]{0}', space=sflag, size = 0x4, scoped, tag = 'scoped memory for tpu_custom_call.1']
    #allocation7 [shape = 'u8[512]{0}', space=vmem, size = 0x400, scoped, tag = 'input window, operand 2, single buffered']
    #allocation8 [shape = 'u8[65536]{0}', space=vmem, size = 0x10000, scoped, tag = 'input window, operand 3, single buffered']
    #allocation9 [shape = 's32[1]{0}', space=sflag, size = 0x4, scoped, tag = 'scoped memory for tpu_custom_call.1']
    #allocation10 [shape = 'u8[1024]{0}', space=vmem, size = 0x400, scoped, tag = 'input window, operand 4, single buffered']
    #allocation11 [shape = 'u8[65536]{0}', space=vmem, size = 0x10000, scoped, tag = 'input window, operand 5, single buffered']
    #allocation12 [shape = 's32[1]{0}', space=sflag, size = 0x4, scoped, tag = 'scoped memory for tpu_custom_call.1']
    #allocation13 [shape = 'u8[1024]{0}', space=vmem, size = 0x400, scoped, tag = 'input window, operand 6, single buffered']
    #allocation14 [shape = 'u8[1024]{0}', space=vmem, size = 0x400, scoped, tag = 'input window, operand 7, single buffered']
    #allocation15 [shape = 's32[1]{0}', space=sflag, size = 0x4, scoped, tag = 'scoped memory for tpu_custom_call.1']
    #allocation16 [shape = 'u8[1024]{0}', space=vmem, size = 0x400, scoped, tag = 'input window, operand 8, single buffered']
    #allocation17 [shape = 'u8[65536]{0}', space=vmem, size = 0x10000, scoped, tag = 'input window, operand 9, single buffered']
    #allocation18 [shape = 's32[1]{0}', space=sflag, size = 0x4, scoped, tag = 'scoped memory for tpu_custom_call.1']
    #allocation19 [shape = 'u8[1024]{0}', space=vmem, size = 0x400, scoped, tag = 'input window, operand 10, single buffered']
    #allocation20 [shape = 'u8[65536]{0}', space=vmem, size = 0x10000, scoped, tag = 'input window, operand 11, single buffered']
    #allocation21 [shape = 's32[1]{0}', space=sflag, size = 0x4, scoped, tag = 'scoped memory for tpu_custom_call.1']
    #allocation22 [shape = 'u8[1024]{0}', space=vmem, size = 0x400, scoped, tag = 'input window, operand 12, single buffered']
    #allocation23 [shape = 'u8[1024]{0}', space=vmem, size = 0x400, scoped, tag = 'input window, operand 13, single buffered']
    #allocation24 [shape = 's32[1]{0}', space=sflag, size = 0x4, scoped, tag = 'scoped memory for tpu_custom_call.1']
    #allocation25 [shape = 'u8[1024]{0}', space=vmem, size = 0x400, scoped, tag = 'input window, operand 14, single buffered']
    #allocation26 [shape = 'u8[512]{0}', space=vmem, size = 0x400, scoped, tag = 'input window, operand 15, single buffered']
    #allocation27 [shape = 's32[1]{0}', space=sflag, size = 0x4, scoped, tag = 'scoped memory for tpu_custom_call.1']
    #allocation28 [shape = 'u8[512]{0}', space=vmem, size = 0x400, scoped, tag = 'input window, operand 16, single buffered']
    #allocation29 [shape = 'u8[32768]{0}', space=vmem, size = 0x8000, scoped, tag = 'input window, operand 19, single buffered']
    #allocation30 [shape = 's32[1]{0}', space=sflag, size = 0x4, scoped, tag = 'scoped memory for tpu_custom_call.1']
    #allocation31 [shape = 'u8[8192]{0}', space=vmem, size = 0x2000, scoped, tag = 'output window, operand 0, single buffered']
    %26 = vsyncpa [#allocation3], 0
    %27 = vsyncpa [#allocation6], 0
    %28 = vsyncpa [#allocation9], 0
    %29 = vsyncpa [#allocation12], 0
    %30 = vsyncpa [#allocation15], 0
    %31 = vsyncpa [#allocation18], 0
    %32 = vsyncpa [#allocation21], 0
    %33 = vsyncpa [#allocation24], 0
    %34 = vsyncpa [#allocation27], 0
    %35 = vsyncpa [#allocation30], 0
    %36 = vsyncpa [#allocation4], 0
    // Predicated region
    $region2: #{tpu_custom_call.1} parent=1 // pred_check
      _
    $region3: #{tpu_custom_call.1} parent=1 // pred_check_branch
      %38 = sbr.rel (0) target = $region5
    $region4: #{tpu_custom_call.1} parent=1 // pred_region
      %s40 = ssub.s32 256, 256
      %41 = vsyncadd [#allocation3], %s40
      %s42 = sshll.u32 [#allocation2], 4
      %s43 = int_to_ptr.vmem [resolvable:$true] %s42
      %48 = dma.hbm_to_vmem [thread:$0]  %s0, 256, %s43, [#allocation3], 128, 128, 8
    $region5: #{tpu_custom_call.1} parent=1 // pred_fallthru
      _
    // Predicated region
    $region6: #{tpu_custom_call.1} parent=1 // pred_check
      _
    $region7: #{tpu_custom_call.1} parent=1 // pred_check_branch
      %50 = sbr.rel (0) target = $region9
    $region8: #{tpu_custom_call.1} parent=1 // pred_region
      %s52 = ssub.s32 128, 128
      %53 = vsyncadd [#allocation6], %s52
      %s54 = sshll.u32 [#allocation5], 4
      %s55 = int_to_ptr.vmem [resolvable:$true] %s54
      %60 = dma.hbm_to_vmem [thread:$0]  %s1, 128, %s55, [#allocation6], 64, 64, 4
    $region9: #{tpu_custom_call.1} parent=1 // pred_fallthru
      _
    // Predicated region
    $region10: #{tpu_custom_call.1} parent=1 // pred_check
      _
    $region11: #{tpu_custom_call.1} parent=1 // pred_check_branch
      %62 = sbr.rel (0) target = $region13
    $region12: #{tpu_custom_call.1} parent=1 // pred_region
      %s64 = ssub.s32 16, 16
      %65 = vsyncadd [#allocation6], %s64
      %s67 = sshll.u32 [#allocation7], 4
      %s68 = int_to_ptr.vmem [resolvable:$true] %s67
      %70 = dma.hbm_to_vmem [thread:$0]  %s2, 16, %s68, [#allocation6]
    $region13: #{tpu_custom_call.1} parent=1 // pred_fallthru
      _
    // Predicated region
    $region14: #{tpu_custom_call.1} parent=1 // pred_check
      _
    $region15: #{tpu_custom_call.1} parent=1 // pred_check_branch
      %72 = sbr.rel (0) target = $region17
    $region16: #{tpu_custom_call.1} parent=1 // pred_region
      %s74 = ssub.s32 2048, 2048
      %75 = vsyncadd [#allocation9], %s74
      %s76 = sshll.u32 [#allocation8], 4
      %s77 = int_to_ptr.vmem [resolvable:$true] %s76
      %82 = dma.hbm_to_vmem [thread:$0]  %s3, 2048, %s77, [#allocation9], 64, 64, 4
    $region17: #{tpu_custom_call.1} parent=1 // pred_fallthru
      _
    // Predicated region
    $region18: #{tpu_custom_call.1} parent=1 // pred_check
      _
    $region19: #{tpu_custom_call.1} parent=1 // pred_check_branch
      %84 = sbr.rel (0) target = $region21
    $region20: #{tpu_custom_call.1} parent=1 // pred_region
      %s86 = ssub.s32 32, 32
      %87 = vsyncadd [#allocation9], %s86
      %s88 = sshll.u32 [#allocation10], 4
      %s89 = int_to_ptr.vmem [resolvable:$true] %s88
      %94 = dma.hbm_to_vmem [thread:$0]  %s4, 32, %s89, [#allocation9], 16, 16, 1
    $region21: #{tpu_custom_call.1} parent=1 // pred_fallthru
      _
    // Predicated region
    $region22: #{tpu_custom_call.1} parent=1 // pred_check
      _
    $region23: #{tpu_custom_call.1} parent=1 // pred_check_branch
      %96 = sbr.rel (0) target = $region25
    $region24: #{tpu_custom_call.1} parent=1 // pred_region
      %s98 = ssub.s32 2048, 2048
      %99 = vsyncadd [#allocation12], %s98
      %s100 = sshll.u32 [#allocation11], 4
      %s101 = int_to_ptr.vmem [resolvable:$true] %s100
      %106 = dma.hbm_to_vmem [thread:$0]  %s5, 2048, %s101, [#allocation12], 64, 64, 4
    $region25: #{tpu_custom_call.1} parent=1 // pred_fallthru
      _
    // Predicated region
    $region26: #{tpu_custom_call.1} parent=1 // pred_check
      _
    $region27: #{tpu_custom_call.1} parent=1 // pred_check_branch
      %108 = sbr.rel (0) target = $region29
    $region28: #{tpu_custom_call.1} parent=1 // pred_region
      %s110 = ssub.s32 32, 32
      %111 = vsyncadd [#allocation12], %s110
      %s112 = sshll.u32 [#allocation13], 4
      %s113 = int_to_ptr.vmem [resolvable:$true] %s112
      %118 = dma.hbm_to_vmem [thread:$0]  %s6, 32, %s113, [#allocation12], 16, 16, 1
    $region29: #{tpu_custom_call.1} parent=1 // pred_fallthru
      _
    // Predicated region
    $region30: #{tpu_custom_call.1} parent=1 // pred_check
      _
    $region31: #{tpu_custom_call.1} parent=1 // pred_check_branch
      %120 = sbr.rel (0) target = $region33
    $region32: #{tpu_custom_call.1} parent=1 // pred_region
      %s122 = ssub.s32 32, 32
      %123 = vsyncadd [#allocation15], %s122
      %s124 = sshll.u32 [#allocation14], 4
      %s125 = int_to_ptr.vmem [resolvable:$true] %s124
      %130 = dma.hbm_to_vmem [thread:$0]  %s7, 32, %s125, [#allocation15], 16, 16, 1
    $region33: #{tpu_custom_call.1} parent=1 // pred_fallthru
      _
    // Predicated region
    $region34: #{tpu_custom_call.1} parent=1 // pred_check
      _
    $region35: #{tpu_custom_call.1} parent=1 // pred_check_branch
      %132 = sbr.rel (0) target = $region37
    $region36: #{tpu_custom_call.1} parent=1 // pred_region
      %s134 = ssub.s32 32, 32
      %135 = vsyncadd [#allocation15], %s134
      %s136 = sshll.u32 [#allocation16], 4
      %s137 = int_to_ptr.vmem [resolvable:$true] %s136
      %142 = dma.hbm_to_vmem [thread:$0]  %s8, 32, %s137, [#allocation15], 16, 16, 1
    $region37: #{tpu_custom_call.1} parent=1 // pred_fallthru
      _
    // Predicated region
    $region38: #{tpu_custom_call.1} parent=1 // pred_check
      _
    $region39: #{tpu_custom_call.1} parent=1 // pred_check_branch
      %144 = sbr.rel (0) target = $region41
    $region40: #{tpu_custom_call.1} parent=1 // pred_region
      %s146 = ssub.s32 2048, 2048
      %147 = vsyncadd [#allocation18], %s146
      %s148 = sshll.u32 [#allocation17], 4
      %s149 = int_to_ptr.vmem [resolvable:$true] %s148
      %154 = dma.hbm_to_vmem [thread:$0]  %s9, 2048, %s149, [#allocation18], 64, 64, 4
    $region41: #{tpu_custom_call.1} parent=1 // pred_fallthru
      _
    // Predicated region
    $region42: #{tpu_custom_call.1} parent=1 // pred_check
      _
    $region43: #{tpu_custom_call.1} parent=1 // pred_check_branch
      %156 = sbr.rel (0) target = $region45
    $region44: #{tpu_custom_call.1} parent=1 // pred_region
      %s158 = ssub.s32 32, 32
      %159 = vsyncadd [#allocation18], %s158
      %s160 = sshll.u32 [#allocation19], 4
      %s161 = int_to_ptr.vmem [resolvable:$true] %s160
      %166 = dma.hbm_to_vmem [thread:$0]  %s10, 32, %s161, [#allocation18], 16, 16, 1
    $region45: #{tpu_custom_call.1} parent=1 // pred_fallthru
      _
    // Predicated region
    $region46: #{tpu_custom_call.1} parent=1 // pred_check
      _
    $region47: #{tpu_custom_call.1} parent=1 // pred_check_branch
      %168 = sbr.rel (0) target = $region49
    $region48: #{tpu_custom_call.1} parent=1 // pred_region
      %s170 = ssub.s32 2048, 2048
      %171 = vsyncadd [#allocation21], %s170
      %s172 = sshll.u32 [#allocation20], 4
      %s173 = int_to_ptr.vmem [resolvable:$true] %s172
      %178 = dma.hbm_to_vmem [thread:$0]  %s11, 2048, %s173, [#allocation21], 64, 64, 4
    $region49: #{tpu_custom_call.1} parent=1 // pred_fallthru
      _
    // Predicated region
    $region50: #{tpu_custom_call.1} parent=1 // pred_check
      _
    $region51: #{tpu_custom_call.1} parent=1 // pred_check_branch
      %180 = sbr.rel (0) target = $region53
    $region52: #{tpu_custom_call.1} parent=1 // pred_region
      %s182 = ssub.s32 32, 32
      %183 = vsyncadd [#allocation21], %s182
      %s184 = sshll.u32 [#allocation22], 4
      %s185 = int_to_ptr.vmem [resolvable:$true] %s184
      %190 = dma.hbm_to_vmem [thread:$0]  %s12, 32, %s185, [#allocation21], 16, 16, 1
    $region53: #{tpu_custom_call.1} parent=1 // pred_fallthru
      _
    // Predicated region
    $region54: #{tpu_custom_call.1} parent=1 // pred_check
      _
    $region55: #{tpu_custom_call.1} parent=1 // pred_check_branch
      %192 = sbr.rel (0) target = $region57
    $region56: #{tpu_custom_call.1} parent=1 // pred_region
      %s194 = ssub.s32 32, 32
      %195 = vsyncadd [#allocation24], %s194
      %s196 = sshll.u32 [#allocation23], 4
      %s197 = int_to_ptr.vmem [resolvable:$true] %s196
      %202 = dma.hbm_to_vmem [thread:$0]  %s13, 32, %s197, [#allocation24], 16, 16, 1
    $region57: #{tpu_custom_call.1} parent=1 // pred_fallthru
      _
    // Predicated region
    $region58: #{tpu_custom_call.1} parent=1 // pred_check
      _
    $region59: #{tpu_custom_call.1} parent=1 // pred_check_branch
      %204 = sbr.rel (0) target = $region61
    $region60: #{tpu_custom_call.1} parent=1 // pred_region
      %s206 = ssub.s32 32, 32
      %207 = vsyncadd [#allocation24], %s206
      %s208 = sshll.u32 [#allocation25], 4
      %s209 = int_to_ptr.vmem [resolvable:$true] %s208
      %214 = dma.hbm_to_vmem [thread:$0]  %s14, 32, %s209, [#allocation24], 16, 16, 1
    $region61: #{tpu_custom_call.1} parent=1 // pred_fallthru
      _
    // Predicated region
    $region62: #{tpu_custom_call.1} parent=1 // pred_check
      _
    $region63: #{tpu_custom_call.1} parent=1 // pred_check_branch
      %216 = sbr.rel (0) target = $region65
    $region64: #{tpu_custom_call.1} parent=1 // pred_region
      %s218 = ssub.s32 16, 16
      %219 = vsyncadd [#allocation27], %s218
      %s221 = sshll.u32 [#allocation26], 4
      %s222 = int_to_ptr.vmem [resolvable:$true] %s221
      %224 = dma.hbm_to_vmem [thread:$0]  %s15, 16, %s222, [#allocation27]
    $region65: #{tpu_custom_call.1} parent=1 // pred_fallthru
      _
    // Predicated region
    $region66: #{tpu_custom_call.1} parent=1 // pred_check
      _
    $region67: #{tpu_custom_call.1} parent=1 // pred_check_branch
      %226 = sbr.rel (0) target = $region69
    $region68: #{tpu_custom_call.1} parent=1 // pred_region
      %s228 = ssub.s32 16, 16
      %229 = vsyncadd [#allocation27], %s228
      %s231 = sshll.u32 [#allocation28], 4
      %s232 = int_to_ptr.vmem [resolvable:$true] %s231
      %234 = dma.hbm_to_vmem [thread:$0]  %s16, 16, %s232, [#allocation27]
    $region69: #{tpu_custom_call.1} parent=1 // pred_fallthru
      _
    // Predicated region
    $region70: #{tpu_custom_call.1} parent=1 // pred_check
      _
    $region71: #{tpu_custom_call.1} parent=1 // pred_check_branch
      %236 = sbr.rel (0) target = $region73
    $region72: #{tpu_custom_call.1} parent=1 // pred_region
      _
    $region73: #{tpu_custom_call.1} parent=1 // pred_fallthru
      _
    // Predicated region
    $region74: #{tpu_custom_call.1} parent=1 // pred_check
      _
    $region75: #{tpu_custom_call.1} parent=1 // pred_check_branch
      %238 = sbr.rel (0) target = $region77
    $region76: #{tpu_custom_call.1} parent=1 // pred_region
      _
    $region77: #{tpu_custom_call.1} parent=1 // pred_fallthru
      _
    // Predicated region
    $region78: #{tpu_custom_call.1} parent=1 // pred_check
      _
    $region79: #{tpu_custom_call.1} parent=1 // pred_check_branch
      %240 = sbr.rel (0) target = $region81
    $region80: #{tpu_custom_call.1} parent=1 // pred_region
      %s242 = ssub.s32 1024, 1024
      %243 = vsyncadd [#allocation30], %s242
      %s244 = sshll.u32 [#allocation29], 4
      %s245 = int_to_ptr.vmem [resolvable:$true] %s244
      %250 = dma.hbm_to_vmem [thread:$0]  %s19, 1024, %s245, [#allocation30], 64, 64, 4
    $region81: #{tpu_custom_call.1} parent=1 // pred_fallthru
      _
    // Predicated region
    $region82: #{tpu_custom_call.1} parent=1 // pred_check
      _
    $region83: #{tpu_custom_call.1} parent=1 // pred_check_branch
      %252 = sbr.rel (0) target = $region85
    $region84: #{tpu_custom_call.1} parent=1 // pred_region
      _
    $region85: #{tpu_custom_call.1} parent=1 // pred_fallthru
      _
    // Predicated region
    $region86: #{tpu_custom_call.1} parent=1 // pred_check
      _
    $region87: #{tpu_custom_call.1} parent=1 // pred_check_branch
      %254 = sbr.rel (0) target = $region89
    $region88: #{tpu_custom_call.1} parent=1 // pred_region
      %255 = dma.done [#allocation3], 256
    $region89: #{tpu_custom_call.1} parent=1 // pred_fallthru
      _
    // Predicated region
    $region90: #{tpu_custom_call.1} parent=1 // pred_check
      _
    $region91: #{tpu_custom_call.1} parent=1 // pred_check_branch
      %257 = sbr.rel (0) target = $region93
    $region92: #{tpu_custom_call.1} parent=1 // pred_region
      %258 = dma.done [#allocation6], 128
    $region93: #{tpu_custom_call.1} parent=1 // pred_fallthru
      _
    // Predicated region
    $region94: #{tpu_custom_call.1} parent=1 // pred_check
      _
    $region95: #{tpu_custom_call.1} parent=1 // pred_check_branch
      %260 = sbr.rel (0) target = $region97
    $region96: #{tpu_custom_call.1} parent=1 // pred_region
      %261 = dma.done [#allocation6], 16
    $region97: #{tpu_custom_call.1} parent=1 // pred_fallthru
      _
    // Predicated region
    $region98: #{tpu_custom_call.1} parent=1 // pred_check
      _
    $region99: #{tpu_custom_call.1} parent=1 // pred_check_branch
      %263 = sbr.rel (0) target = $region101
    $region100: #{tpu_custom_call.1} parent=1 // pred_region
      %264 = dma.done [#allocation9], 2048
    $region101: #{tpu_custom_call.1} parent=1 // pred_fallthru
      _
    // Predicated region
    $region102: #{tpu_custom_call.1} parent=1 // pred_check
      _
    $region103: #{tpu_custom_call.1} parent=1 // pred_check_branch
      %266 = sbr.rel (0) target = $region105
    $region104: #{tpu_custom_call.1} parent=1 // pred_region
      %267 = dma.done [#allocation9], 32
    $region105: #{tpu_custom_call.1} parent=1 // pred_fallthru
      _
    // Predicated region
    $region106: #{tpu_custom_call.1} parent=1 // pred_check
      _
    $region107: #{tpu_custom_call.1} parent=1 // pred_check_branch
      %269 = sbr.rel (0) target = $region109
    $region108: #{tpu_custom_call.1} parent=1 // pred_region
      %270 = dma.done [#allocation12], 2048
    $region109: #{tpu_custom_call.1} parent=1 // pred_fallthru
      _
    // Predicated region
    $region110: #{tpu_custom_call.1} parent=1 // pred_check
      _
    $region111: #{tpu_custom_call.1} parent=1 // pred_check_branch
      %272 = sbr.rel (0) target = $region113
    $region112: #{tpu_custom_call.1} parent=1 // pred_region
      %273 = dma.done [#allocation12], 32
    $region113: #{tpu_custom_call.1} parent=1 // pred_fallthru
      _
    // Predicated region
    $region114: #{tpu_custom_call.1} parent=1 // pred_check
      _
    $region115: #{tpu_custom_call.1} parent=1 // pred_check_branch
      %275 = sbr.rel (0) target = $region117
    $region116: #{tpu_custom_call.1} parent=1 // pred_region
      %276 = dma.done [#allocation15], 32
    $region117: #{tpu_custom_call.1} parent=1 // pred_fallthru
      _
    // Predicated region
    $region118: #{tpu_custom_call.1} parent=1 // pred_check
      _
    $region119: #{tpu_custom_call.1} parent=1 // pred_check_branch
      %278 = sbr.rel (0) target = $region121
    $region120: #{tpu_custom_call.1} parent=1 // pred_region
      %279 = dma.done [#allocation15], 32
    $region121: #{tpu_custom_call.1} parent=1 // pred_fallthru
      _
    // Predicated region
    $region122: #{tpu_custom_call.1} parent=1 // pred_check
      _
    $region123: #{tpu_custom_call.1} parent=1 // pred_check_branch
      %281 = sbr.rel (0) target = $region125
    $region124: #{tpu_custom_call.1} parent=1 // pred_region
      %282 = dma.done [#allocation18], 2048
    $region125: #{tpu_custom_call.1} parent=1 // pred_fallthru
      _
    // Predicated region
    $region126: #{tpu_custom_call.1} parent=1 // pred_check
      _
    $region127: #{tpu_custom_call.1} parent=1 // pred_check_branch
      %284 = sbr.rel (0) target = $region129
    $region128: #{tpu_custom_call.1} parent=1 // pred_region
      %285 = dma.done [#allocation18], 32
    $region129: #{tpu_custom_call.1} parent=1 // pred_fallthru
      _
    // Predicated region
    $region130: #{tpu_custom_call.1} parent=1 // pred_check
      _
    $region131: #{tpu_custom_call.1} parent=1 // pred_check_branch
      %287 = sbr.rel (0) target = $region133
    $region132: #{tpu_custom_call.1} parent=1 // pred_region
      %288 = dma.done [#allocation21], 2048
    $region133: #{tpu_custom_call.1} parent=1 // pred_fallthru
      _
    // Predicated region
    $region134: #{tpu_custom_call.1} parent=1 // pred_check
      _
    $region135: #{tpu_custom_call.1} parent=1 // pred_check_branch
      %290 = sbr.rel (0) target = $region137
    $region136: #{tpu_custom_call.1} parent=1 // pred_region
      %291 = dma.done [#allocation21], 32
    $region137: #{tpu_custom_call.1} parent=1 // pred_fallthru
      _
    // Predicated region
    $region138: #{tpu_custom_call.1} parent=1 // pred_check
      _
    $region139: #{tpu_custom_call.1} parent=1 // pred_check_branch
      %293 = sbr.rel (0) target = $region141
    $region140: #{tpu_custom_call.1} parent=1 // pred_region
      %294 = dma.done [#allocation24], 32
    $region141: #{tpu_custom_call.1} parent=1 // pred_fallthru
      _
    // Predicated region
    $region142: #{tpu_custom_call.1} parent=1 // pred_check
      _
    $region143: #{tpu_custom_call.1} parent=1 // pred_check_branch
      %296 = sbr.rel (0) target = $region145
    $region144: #{tpu_custom_call.1} parent=1 // pred_region
      %297 = dma.done [#allocation24], 32
    $region145: #{tpu_custom_call.1} parent=1 // pred_fallthru
      _
    // Predicated region
    $region146: #{tpu_custom_call.1} parent=1 // pred_check
      _
    $region147: #{tpu_custom_call.1} parent=1 // pred_check_branch
      %299 = sbr.rel (0) target = $region149
    $region148: #{tpu_custom_call.1} parent=1 // pred_region
      %300 = dma.done [#allocation27], 16
    $region149: #{tpu_custom_call.1} parent=1 // pred_fallthru
      _
    // Predicated region
    $region150: #{tpu_custom_call.1} parent=1 // pred_check
      _
    $region151: #{tpu_custom_call.1} parent=1 // pred_check_branch
      %302 = sbr.rel (0) target = $region153
    $region152: #{tpu_custom_call.1} parent=1 // pred_region
      %303 = dma.done [#allocation27], 16
    $region153: #{tpu_custom_call.1} parent=1 // pred_fallthru
      _
    // Predicated region
    $region154: #{tpu_custom_call.1} parent=1 // pred_check
      _
    $region155: #{tpu_custom_call.1} parent=1 // pred_check_branch
      %305 = sbr.rel (0) target = $region157
    $region156: #{tpu_custom_call.1} parent=1 // pred_region
      %306 = dma.done [#allocation30], 1024
    $region157: #{tpu_custom_call.1} parent=1 // pred_fallthru
      _
    %v308 = vld [vmem:[#allocation2] sm:$0xff]
    %v309 = vld [vmem:[#allocation2 + $0x8] sm:$0xff]
    %v310 = vld [vmem:[#allocation5] sm:$0xf]
    %v311 = vld [vmem:[#allocation5 + $0x4] sm:$0xf]
    %v312 = vpack.c.bf16 %v309, %v308
    %v313 = vld [vmem:[#allocation7] sm:$0x1]
    %v315 = vlaneseq
    %v316 = vshrl.u32 %v315, 7
    %v317 = vsub.s32 0, %v316
    %v318 = vrot.slane %v313, %v317
    %v322 = vunpack.c.l.b16 %v310
    %v323 = vunpack.c.l.b16 %v311
    %v324 = vpack.c.b16 %v323, %v322
    %vm326 = vcmask 130048
    %v328 = vsel %vm326, %v312, 0
    %330 = vmatprep.subr.bf16.mxu0 0
    %331 = vmatpush1.bf16.msra.mxu0 %v324
    %332 = vmatprep.subr.bf16.mxu0 0
    %333 = vmatpush1.bf16.msra.mxu0 0
    %334 = vmatprep.subr.bf16.mxu0 0
    %335 = vmatpush1.bf16.msra.mxu0 0
    %336 = vmatprep.subr.bf16.mxu0 0
    %337 = vmatpush1.bf16.msra.mxu0 0
    %338 = vmatprep.subr.bf16.mxu0 0
    %339 = vmatpush1.bf16.msra.mxu0 0
    %340 = vmatprep.subr.bf16.mxu0 0
    %341 = vmatpush1.bf16.msra.mxu0 0
    %342 = vmatprep.subr.bf16.mxu0 0
    %343 = vmatpush1.bf16.msra.mxu0 0
    %344 = vmatprep.subr.bf16.mxu0 0
    %345 = vmatpush1.bf16.msra.mxu0 0
    %346 = vmatprep.subr.bf16.mxu0 0
    %347 = vmatpush1.bf16.msra.mxu0 0
    %348 = vmatprep.subr.bf16.mxu0 0
    %349 = vmatpush1.bf16.msra.mxu0 0
    %350 = vmatprep.subr.bf16.mxu0 0
    %351 = vmatpush1.bf16.msra.mxu0 0
    %352 = vmatprep.subr.bf16.mxu0 0
    %353 = vmatpush1.bf16.msra.mxu0 0
    %354 = vmatprep.subr.bf16.mxu0 0
    %355 = vmatpush1.bf16.msra.mxu0 0
    %356 = vmatprep.subr.bf16.mxu0 0
    %357 = vmatpush1.bf16.msra.mxu0 0
    %358 = vmatprep.subr.bf16.mxu0 0
    %359 = vmatpush1.bf16.msra.mxu0 0
    %360 = vmatprep.subr.bf16.mxu0 0
    %361 = vmatpush1.bf16.msra.mxu0 0
    %362 = vmatprep.mubr.bf16.mxu0 0
    %363 = vmatmul.mubr.bf16.gmra.mrb[0].mxu0 %v328
    %v364 = vpop.f32.mrb[0].mxu0
    %v365 = vadd.f32 %v318, %v364
    %v366 = vpop.f32.mrb[0].mxu0
    %v367 = vpop.f32.mrb[0].mxu0
    %v368 = vadd.f32 %v318, %v367
    %v369 = vpop.f32.mrb[0].mxu0
    %370 = vdwg.mxu0
    %v371 = vld [vmem:[#allocation8] sm:$0xf]
    %v372 = vld [vmem:[#allocation8 + $0x4] sm:$0xf]
    %v373 = vld [vmem:[#allocation8 + $0x8] sm:$0xf]
    %v374 = vld [vmem:[#allocation8 + $0xc] sm:$0xf]
    %v375 = vld [vmem:[#allocation8 + $0x10] sm:$0xf]
    %v376 = vld [vmem:[#allocation8 + $0x14] sm:$0xf]
    %v377 = vld [vmem:[#allocation8 + $0x18] sm:$0xf]
    %v378 = vld [vmem:[#allocation8 + $0x1c] sm:$0xf]
    %v379 = vld [vmem:[#allocation8 + $0x20] sm:$0xf]
    %v380 = vld [vmem:[#allocation8 + $0x24] sm:$0xf]
    %v381 = vld [vmem:[#allocation8 + $0x28] sm:$0xf]
    %v382 = vld [vmem:[#allocation8 + $0x2c] sm:$0xf]
    %v383 = vld [vmem:[#allocation8 + $0x30] sm:$0xf]
    %v384 = vld [vmem:[#allocation8 + $0x34] sm:$0xf]
    %v385 = vld [vmem:[#allocation8 + $0x38] sm:$0xf]
    %v386 = vld [vmem:[#allocation8 + $0x3c] sm:$0xf]
    %v387 = vpack.c.bf16 %v368, %v365
    %v388 = vld [vmem:[#allocation10] sm:$0x1]
    %v390 = vlaneseq
    %v391 = vshrl.u32 %v390, 7
    %v392 = vsub.s32 0, %v391
    %v393 = vrot.slane %v388, %v392
    %v411 = vunpack.c.l.b16 %v371
    %v412 = vunpack.c.l.b16 %v372
    %v413 = vunpack.c.l.b16 %v373
    %v414 = vunpack.c.l.b16 %v374
    %v415 = vunpack.c.l.b16 %v375
    %v416 = vunpack.c.l.b16 %v376
    %v417 = vunpack.c.l.b16 %v377
    %v418 = vunpack.c.l.b16 %v378
    %v419 = vunpack.c.l.b16 %v379
    %v420 = vunpack.c.l.b16 %v380
    %v421 = vunpack.c.l.b16 %v381
    %v422 = vunpack.c.l.b16 %v382
    %v423 = vunpack.c.l.b16 %v383
    %v424 = vunpack.c.l.b16 %v384
    %v425 = vunpack.c.l.b16 %v385
    %v426 = vunpack.c.l.b16 %v386
    %v427 = vpack.c.b16 %v412, %v411
    %v428 = vpack.c.b16 %v414, %v413
    %v429 = vpack.c.b16 %v416, %v415
    %v430 = vpack.c.b16 %v418, %v417
    %v431 = vpack.c.b16 %v420, %v419
    %v432 = vpack.c.b16 %v422, %v421
    %v433 = vpack.c.b16 %v424, %v423
    %v434 = vpack.c.b16 %v426, %v425
    %443 = vmatprep.subr.bf16.mxu0 0
    %444 = vmatpush1.bf16.msra.mxu0 %v427
    %445 = vmatprep.subr.bf16.mxu0 0
    %446 = vmatpush1.bf16.msra.mxu0 %v428
    %447 = vmatprep.subr.bf16.mxu0 0
    %448 = vmatpush1.bf16.msra.mxu0 %v429
    %449 = vmatprep.subr.bf16.mxu0 0
    %450 = vmatpush1.bf16.msra.mxu0 %v430
    %451 = vmatprep.subr.bf16.mxu0 0
    %452 = vmatpush1.bf16.msra.mxu0 %v431
    %453 = vmatprep.subr.bf16.mxu0 0
    %454 = vmatpush1.bf16.msra.mxu0 %v432
    %455 = vmatprep.subr.bf16.mxu0 0
    %456 = vmatpush1.bf16.msra.mxu0 %v433
    %457 = vmatprep.subr.bf16.mxu0 0
    %458 = vmatpush1.bf16.msra.mxu0 %v434
    %459 = vmatprep.subr.bf16.mxu0 0
    %460 = vmatpush1.bf16.msra.mxu0 0
    %461 = vmatprep.subr.bf16.mxu0 0
    %462 = vmatpush1.bf16.msra.mxu0 0
    %463 = vmatprep.subr.bf16.mxu0 0
    %464 = vmatpush1.bf16.msra.mxu0 0
    %465 = vmatprep.subr.bf16.mxu0 0
    %466 = vmatpush1.bf16.msra.mxu0 0
    %467 = vmatprep.subr.bf16.mxu0 0
    %468 = vmatpush1.bf16.msra.mxu0 0
    %469 = vmatprep.subr.bf16.mxu0 0
    %470 = vmatpush1.bf16.msra.mxu0 0
    %471 = vmatprep.subr.bf16.mxu0 0
    %472 = vmatpush1.bf16.msra.mxu0 0
    %473 = vmatprep.subr.bf16.mxu0 0
    %474 = vmatpush1.bf16.msra.mxu0 0
    %475 = vmatprep.mubr.bf16.mxu0 0
    %476 = vmatmul.mubr.bf16.gmra.mrb[0].mxu0 %v387
    %v477 = vpop.f32.mrb[0].mxu0
    %v478 = vadd.f32 %v393, %v477
    %v479 = vpop.f32.mrb[0].mxu0
    %v480 = vpop.f32.mrb[0].mxu0
    %v481 = vadd.f32 %v393, %v480
    %v482 = vpop.f32.mrb[0].mxu0
    %483 = vdwg.mxu0
    %v484 = vld [vmem:[#allocation11] sm:$0xf]
    %v485 = vld [vmem:[#allocation11 + $0x4] sm:$0xf]
    %v486 = vld [vmem:[#allocation11 + $0x8] sm:$0xf]
    %v487 = vld [vmem:[#allocation11 + $0xc] sm:$0xf]
    %v488 = vld [vmem:[#allocation11 + $0x10] sm:$0xf]
    %v489 = vld [vmem:[#allocation11 + $0x14] sm:$0xf]
    %v490 = vld [vmem:[#allocation11 + $0x18] sm:$0xf]
    %v491 = vld [vmem:[#allocation11 + $0x1c] sm:$0xf]
    %v492 = vld [vmem:[#allocation11 + $0x20] sm:$0xf]
    %v493 = vld [vmem:[#allocation11 + $0x24] sm:$0xf]
    %v494 = vld [vmem:[#allocation11 + $0x28] sm:$0xf]
    %v495 = vld [vmem:[#allocation11 + $0x2c] sm:$0xf]
    %v496 = vld [vmem:[#allocation11 + $0x30] sm:$0xf]
    %v497 = vld [vmem:[#allocation11 + $0x34] sm:$0xf]
    %v498 = vld [vmem:[#allocation11 + $0x38] sm:$0xf]
    %v499 = vld [vmem:[#allocation11 + $0x3c] sm:$0xf]
    %v500 = vpack.c.bf16 %v481, %v478
    %v501 = vld [vmem:[#allocation13] sm:$0x1]
    %v503 = vlaneseq
    %v504 = vshrl.u32 %v503, 7
    %v505 = vsub.s32 0, %v504
    %v506 = vrot.slane %v501, %v505
    %v524 = vunpack.c.l.b16 %v484
    %v525 = vunpack.c.l.b16 %v485
    %v526 = vunpack.c.l.b16 %v486
    %v527 = vunpack.c.l.b16 %v487
    %v528 = vunpack.c.l.b16 %v488
    %v529 = vunpack.c.l.b16 %v489
    %v530 = vunpack.c.l.b16 %v490
    %v531 = vunpack.c.l.b16 %v491
    %v532 = vunpack.c.l.b16 %v492
    %v533 = vunpack.c.l.b16 %v493
    %v534 = vunpack.c.l.b16 %v494
    %v535 = vunpack.c.l.b16 %v495
    %v536 = vunpack.c.l.b16 %v496
    %v537 = vunpack.c.l.b16 %v497
    %v538 = vunpack.c.l.b16 %v498
    %v539 = vunpack.c.l.b16 %v499
    %v540 = vpack.c.b16 %v525, %v524
    %v541 = vpack.c.b16 %v527, %v526
    %v542 = vpack.c.b16 %v529, %v528
    %v543 = vpack.c.b16 %v531, %v530
    %v544 = vpack.c.b16 %v533, %v532
    %v545 = vpack.c.b16 %v535, %v534
    %v546 = vpack.c.b16 %v537, %v536
    %v547 = vpack.c.b16 %v539, %v538
    %556 = vmatprep.subr.bf16.mxu0 0
    %557 = vmatpush1.bf16.msra.mxu0 %v540
    %558 = vmatprep.subr.bf16.mxu0 0
    %559 = vmatpush1.bf16.msra.mxu0 %v541
    %560 = vmatprep.subr.bf16.mxu0 0
    %561 = vmatpush1.bf16.msra.mxu0 %v542
    %562 = vmatprep.subr.bf16.mxu0 0
    %563 = vmatpush1.bf16.msra.mxu0 %v543
    %564 = vmatprep.subr.bf16.mxu0 0
    %565 = vmatpush1.bf16.msra.mxu0 %v544
    %566 = vmatprep.subr.bf16.mxu0 0
    %567 = vmatpush1.bf16.msra.mxu0 %v545
    %568 = vmatprep.subr.bf16.mxu0 0
    %569 = vmatpush1.bf16.msra.mxu0 %v546
    %570 = vmatprep.subr.bf16.mxu0 0
    %571 = vmatpush1.bf16.msra.mxu0 %v547
    %572 = vmatprep.subr.bf16.mxu0 0
    %573 = vmatpush1.bf16.msra.mxu0 0
    %574 = vmatprep.subr.bf16.mxu0 0
    %575 = vmatpush1.bf16.msra.mxu0 0
    %576 = vmatprep.subr.bf16.mxu0 0
    %577 = vmatpush1.bf16.msra.mxu0 0
    %578 = vmatprep.subr.bf16.mxu0 0
    %579 = vmatpush1.bf16.msra.mxu0 0
    %580 = vmatprep.subr.bf16.mxu0 0
    %581 = vmatpush1.bf16.msra.mxu0 0
    %582 = vmatprep.subr.bf16.mxu0 0
    %583 = vmatpush1.bf16.msra.mxu0 0
    %584 = vmatprep.subr.bf16.mxu0 0
    %585 = vmatpush1.bf16.msra.mxu0 0
    %586 = vmatprep.subr.bf16.mxu0 0
    %587 = vmatpush1.bf16.msra.mxu0 0
    %588 = vmatprep.mubr.bf16.mxu0 0
    %589 = vmatmul.mubr.bf16.gmra.mrb[0].mxu0 %v500
    %v590 = vpop.f32.mrb[0].mxu0
    %v591 = vadd.f32 %v506, %v590
    %v592 = vpop.f32.mrb[0].mxu0
    %v593 = vpop.f32.mrb[0].mxu0
    %v594 = vadd.f32 %v506, %v593
    %v595 = vpop.f32.mrb[0].mxu0
    %596 = vdwg.mxu0
    %v597 = vadd.f32 %v365, %v591
    %v598 = vadd.f32 %v368, %v594
    %v599 = vld [vmem:[#allocation14] sm:$0x1]
    %v600 = vld [vmem:[#allocation16] sm:$0x1]
    %601 = vadd.xlane.f32.xlu0 %v597
    %v602 = vpop.xlane.xlu0 %601
    %603 = vadd.xlane.f32.xlu0 %v598
    %v604 = vpop.xlane.xlu0 %603
    %v605 = vmul.f32 %v597, %v597
    %v606 = vmul.f32 %v598, %v598
    %607 = vadd.xlane.f32.xlu0 %v605
    %v608 = vpop.xlane.xlu0 %607
    %609 = vadd.xlane.f32.xlu0 %v606
    %v610 = vpop.xlane.xlu0 %609
    %v611 = vmul.f32 %v602, 0.03125
    %v612 = vmul.f32 %v604, 0.03125
    %v613 = vmul.f32 %v608, 0.03125
    %v614 = vmul.f32 %v610, 0.03125
    %v615 = vmul.f32 %v611, %v611
    %v616 = vmul.f32 %v612, %v612
    %v617 = vsub.f32 %v613, %v615
    %v618 = vsub.f32 %v614, %v616
    %v619 = vadd.f32 %v617, 1e-05
    %v620 = vadd.f32 %v618, 1e-05
    %v621 = vrsqrt.pop %v619
    %v622 = vrsqrt.pop %v620
    %v623 = vsub.f32 %v597, %v611
    %v624 = vsub.f32 %v598, %v612
    %v625 = vmul.f32 %v623, %v621
    %v626 = vmul.f32 %v624, %v622
    %v628 = vlaneseq
    %v629 = vshrl.u32 %v628, 7
    %v630 = vsub.s32 0, %v629
    %v631 = vrot.slane %v599, %v630
    %v633 = vmul.f32 %v625, %v631
    %v634 = vmul.f32 %v626, %v631
    %v636 = vlaneseq
    %v637 = vshrl.u32 %v636, 7
    %v638 = vsub.s32 0, %v637
    %v639 = vrot.slane %v600, %v638
    %v641 = vadd.f32 %v633, %v639
    %v642 = vadd.f32 %v634, %v639
    %v643 = vld [vmem:[#allocation17] sm:$0xf]
    %v644 = vld [vmem:[#allocation17 + $0x4] sm:$0xf]
    %v645 = vld [vmem:[#allocation17 + $0x8] sm:$0xf]
    %v646 = vld [vmem:[#allocation17 + $0xc] sm:$0xf]
    %v647 = vld [vmem:[#allocation17 + $0x10] sm:$0xf]
    %v648 = vld [vmem:[#allocation17 + $0x14] sm:$0xf]
    %v649 = vld [vmem:[#allocation17 + $0x18] sm:$0xf]
    %v650 = vld [vmem:[#allocation17 + $0x1c] sm:$0xf]
    %v651 = vld [vmem:[#allocation17 + $0x20] sm:$0xf]
    %v652 = vld [vmem:[#allocation17 + $0x24] sm:$0xf]
    %v653 = vld [vmem:[#allocation17 + $0x28] sm:$0xf]
    %v654 = vld [vmem:[#allocation17 + $0x2c] sm:$0xf]
    %v655 = vld [vmem:[#allocation17 + $0x30] sm:$0xf]
    %v656 = vld [vmem:[#allocation17 + $0x34] sm:$0xf]
    %v657 = vld [vmem:[#allocation17 + $0x38] sm:$0xf]
    %v658 = vld [vmem:[#allocation17 + $0x3c] sm:$0xf]
    %v659 = vpack.c.bf16 %v642, %v641
    %v660 = vld [vmem:[#allocation19] sm:$0x1]
    %v662 = vlaneseq
    %v663 = vshrl.u32 %v662, 7
    %v664 = vsub.s32 0, %v663
    %v665 = vrot.slane %v660, %v664
    %v683 = vunpack.c.l.b16 %v643
    %v684 = vunpack.c.l.b16 %v644
    %v685 = vunpack.c.l.b16 %v645
    %v686 = vunpack.c.l.b16 %v646
    %v687 = vunpack.c.l.b16 %v647
    %v688 = vunpack.c.l.b16 %v648
    %v689 = vunpack.c.l.b16 %v649
    %v690 = vunpack.c.l.b16 %v650
    %v691 = vunpack.c.l.b16 %v651
    %v692 = vunpack.c.l.b16 %v652
    %v693 = vunpack.c.l.b16 %v653
    %v694 = vunpack.c.l.b16 %v654
    %v695 = vunpack.c.l.b16 %v655
    %v696 = vunpack.c.l.b16 %v656
    %v697 = vunpack.c.l.b16 %v657
    %v698 = vunpack.c.l.b16 %v658
    %v699 = vpack.c.b16 %v684, %v683
    %v700 = vpack.c.b16 %v686, %v685
    %v701 = vpack.c.b16 %v688, %v687
    %v702 = vpack.c.b16 %v690, %v689
    %v703 = vpack.c.b16 %v692, %v691
    %v704 = vpack.c.b16 %v694, %v693
    %v705 = vpack.c.b16 %v696, %v695
    %v706 = vpack.c.b16 %v698, %v697
    %715 = vmatprep.subr.bf16.mxu0 0
    %716 = vmatpush1.bf16.msra.mxu0 %v699
    %717 = vmatprep.subr.bf16.mxu0 0
    %718 = vmatpush1.bf16.msra.mxu0 %v700
    %719 = vmatprep.subr.bf16.mxu0 0
    %720 = vmatpush1.bf16.msra.mxu0 %v701
    %721 = vmatprep.subr.bf16.mxu0 0
    %722 = vmatpush1.bf16.msra.mxu0 %v702
    %723 = vmatprep.subr.bf16.mxu0 0
    %724 = vmatpush1.bf16.msra.mxu0 %v703
    %725 = vmatprep.subr.bf16.mxu0 0
    %726 = vmatpush1.bf16.msra.mxu0 %v704
    %727 = vmatprep.subr.bf16.mxu0 0
    %728 = vmatpush1.bf16.msra.mxu0 %v705
    %729 = vmatprep.subr.bf16.mxu0 0
    %730 = vmatpush1.bf16.msra.mxu0 %v706
    %731 = vmatprep.subr.bf16.mxu0 0
    %732 = vmatpush1.bf16.msra.mxu0 0
    %733 = vmatprep.subr.bf16.mxu0 0
    %734 = vmatpush1.bf16.msra.mxu0 0
    %735 = vmatprep.subr.bf16.mxu0 0
    %736 = vmatpush1.bf16.msra.mxu0 0
    %737 = vmatprep.subr.bf16.mxu0 0
    %738 = vmatpush1.bf16.msra.mxu0 0
    %739 = vmatprep.subr.bf16.mxu0 0
    %740 = vmatpush1.bf16.msra.mxu0 0
    %741 = vmatprep.subr.bf16.mxu0 0
    %742 = vmatpush1.bf16.msra.mxu0 0
    %743 = vmatprep.subr.bf16.mxu0 0
    %744 = vmatpush1.bf16.msra.mxu0 0
    %745 = vmatprep.subr.bf16.mxu0 0
    %746 = vmatpush1.bf16.msra.mxu0 0
    %747 = vmatprep.mubr.bf16.mxu0 0
    %748 = vmatmul.mubr.bf16.gmra.mrb[0].mxu0 %v659
    %v749 = vpop.f32.mrb[0].mxu0
    %v750 = vadd.f32 %v665, %v749
    %v751 = vpop.f32.mrb[0].mxu0
    %v752 = vpop.f32.mrb[0].mxu0
    %v753 = vadd.f32 %v665, %v752
    %v754 = vpop.f32.mrb[0].mxu0
    %755 = vdwg.mxu0
    %v756 = vmul.f32 %v750, 0.5
    %v757 = vmul.f32 %v753, 0.5
    %v758 = vmul.f32 %v750, 0.70710677
    %v759 = vmul.f32 %v753, 0.70710677
    %v760 = verf.f32.pop %v758
    %v761 = verf.f32.pop %v759
    %v762 = vadd.f32 %v760, 1.0
    %v763 = vadd.f32 %v761, 1.0
    %v764 = vmul.f32 %v756, %v762
    %v765 = vmul.f32 %v757, %v763
    %v766 = vld [vmem:[#allocation20] sm:$0xf]
    %v767 = vld [vmem:[#allocation20 + $0x4] sm:$0xf]
    %v768 = vld [vmem:[#allocation20 + $0x8] sm:$0xf]
    %v769 = vld [vmem:[#allocation20 + $0xc] sm:$0xf]
    %v770 = vld [vmem:[#allocation20 + $0x10] sm:$0xf]
    %v771 = vld [vmem:[#allocation20 + $0x14] sm:$0xf]
    %v772 = vld [vmem:[#allocation20 + $0x18] sm:$0xf]
    %v773 = vld [vmem:[#allocation20 + $0x1c] sm:$0xf]
    %v774 = vld [vmem:[#allocation20 + $0x20] sm:$0xf]
    %v775 = vld [vmem:[#allocation20 + $0x24] sm:$0xf]
    %v776 = vld [vmem:[#allocation20 + $0x28] sm:$0xf]
    %v777 = vld [vmem:[#allocation20 + $0x2c] sm:$0xf]
    %v778 = vld [vmem:[#allocation20 + $0x30] sm:$0xf]
    %v779 = vld [vmem:[#allocation20 + $0x34] sm:$0xf]
    %v780 = vld [vmem:[#allocation20 + $0x38] sm:$0xf]
    %v781 = vld [vmem:[#allocation20 + $0x3c] sm:$0xf]
    %v782 = vpack.c.bf16 %v765, %v764
    %v783 = vld [vmem:[#allocation22] sm:$0x1]
    %v785 = vlaneseq
    %v786 = vshrl.u32 %v785, 7
    %v787 = vsub.s32 0, %v786
    %v788 = vrot.slane %v783, %v787
    %v806 = vunpack.c.l.b16 %v766
    %v807 = vunpack.c.l.b16 %v767
    %v808 = vunpack.c.l.b16 %v768
    %v809 = vunpack.c.l.b16 %v769
    %v810 = vunpack.c.l.b16 %v770
    %v811 = vunpack.c.l.b16 %v771
    %v812 = vunpack.c.l.b16 %v772
    %v813 = vunpack.c.l.b16 %v773
    %v814 = vunpack.c.l.b16 %v774
    %v815 = vunpack.c.l.b16 %v775
    %v816 = vunpack.c.l.b16 %v776
    %v817 = vunpack.c.l.b16 %v777
    %v818 = vunpack.c.l.b16 %v778
    %v819 = vunpack.c.l.b16 %v779
    %v820 = vunpack.c.l.b16 %v780
    %v821 = vunpack.c.l.b16 %v781
    %v822 = vpack.c.b16 %v807, %v806
    %v823 = vpack.c.b16 %v809, %v808
    %v824 = vpack.c.b16 %v811, %v810
    %v825 = vpack.c.b16 %v813, %v812
    %v826 = vpack.c.b16 %v815, %v814
    %v827 = vpack.c.b16 %v817, %v816
    %v828 = vpack.c.b16 %v819, %v818
    %v829 = vpack.c.b16 %v821, %v820
    %838 = vmatprep.subr.bf16.mxu0 0
    %839 = vmatpush1.bf16.msra.mxu0 %v822
    %840 = vmatprep.subr.bf16.mxu0 0
    %841 = vmatpush1.bf16.msra.mxu0 %v823
    %842 = vmatprep.subr.bf16.mxu0 0
    %843 = vmatpush1.bf16.msra.mxu0 %v824
    %844 = vmatprep.subr.bf16.mxu0 0
    %845 = vmatpush1.bf16.msra.mxu0 %v825
    %846 = vmatprep.subr.bf16.mxu0 0
    %847 = vmatpush1.bf16.msra.mxu0 %v826
    %848 = vmatprep.subr.bf16.mxu0 0
    %849 = vmatpush1.bf16.msra.mxu0 %v827
    %850 = vmatprep.subr.bf16.mxu0 0
    %851 = vmatpush1.bf16.msra.mxu0 %v828
    %852 = vmatprep.subr.bf16.mxu0 0
    %853 = vmatpush1.bf16.msra.mxu0 %v829
    %854 = vmatprep.subr.bf16.mxu0 0
    %855 = vmatpush1.bf16.msra.mxu0 0
    %856 = vmatprep.subr.bf16.mxu0 0
    %857 = vmatpush1.bf16.msra.mxu0 0
    %858 = vmatprep.subr.bf16.mxu0 0
    %859 = vmatpush1.bf16.msra.mxu0 0
    %860 = vmatprep.subr.bf16.mxu0 0
    %861 = vmatpush1.bf16.msra.mxu0 0
    %862 = vmatprep.subr.bf16.mxu0 0
    %863 = vmatpush1.bf16.msra.mxu0 0
    %864 = vmatprep.subr.bf16.mxu0 0
    %865 = vmatpush1.bf16.msra.mxu0 0
    %866 = vmatprep.subr.bf16.mxu0 0
    %867 = vmatpush1.bf16.msra.mxu0 0
    %868 = vmatprep.subr.bf16.mxu0 0
    %869 = vmatpush1.bf16.msra.mxu0 0
    %870 = vmatprep.mubr.bf16.mxu0 0
    %871 = vmatmul.mubr.bf16.gmra.mrb[0].mxu0 %v782
    %v872 = vpop.f32.mrb[0].mxu0
    %v873 = vadd.f32 %v788, %v872
    %v874 = vpop.f32.mrb[0].mxu0
    %v875 = vpop.f32.mrb[0].mxu0
    %v876 = vadd.f32 %v788, %v875
    %v877 = vpop.f32.mrb[0].mxu0
    %878 = vdwg.mxu0
    %v879 = vadd.f32 %v641, %v873
    %v880 = vadd.f32 %v642, %v876
    %v881 = vld [vmem:[#allocation23] sm:$0x1]
    %v882 = vld [vmem:[#allocation25] sm:$0x1]
    %883 = vadd.xlane.f32.xlu0 %v879
    %v884 = vpop.xlane.xlu0 %883
    %885 = vadd.xlane.f32.xlu0 %v880
    %v886 = vpop.xlane.xlu0 %885
    %v887 = vmul.f32 %v879, %v879
    %v888 = vmul.f32 %v880, %v880
    %889 = vadd.xlane.f32.xlu0 %v887
    %v890 = vpop.xlane.xlu0 %889
    %891 = vadd.xlane.f32.xlu0 %v888
    %v892 = vpop.xlane.xlu0 %891
    %v893 = vmul.f32 %v884, 0.03125
    %v894 = vmul.f32 %v886, 0.03125
    %v895 = vmul.f32 %v890, 0.03125
    %v896 = vmul.f32 %v892, 0.03125
    %v897 = vmul.f32 %v893, %v893
    %v898 = vmul.f32 %v894, %v894
    %v899 = vsub.f32 %v895, %v897
    %v900 = vsub.f32 %v896, %v898
    %v901 = vadd.f32 %v899, 1e-05
    %v902 = vadd.f32 %v900, 1e-05
    %v903 = vrsqrt.pop %v901
    %v904 = vrsqrt.pop %v902
    %v905 = vsub.f32 %v879, %v893
    %v906 = vsub.f32 %v880, %v894
    %v907 = vmul.f32 %v905, %v903
    %v908 = vmul.f32 %v906, %v904
    %v910 = vlaneseq
    %v911 = vshrl.u32 %v910, 7
    %v912 = vsub.s32 0, %v911
    %v913 = vrot.slane %v881, %v912
    %v915 = vmul.f32 %v907, %v913
    %v916 = vmul.f32 %v908, %v913
    %v918 = vlaneseq
    %v919 = vshrl.u32 %v918, 7
    %v920 = vsub.s32 0, %v919
    %v921 = vrot.slane %v882, %v920
    %v923 = vadd.f32 %v915, %v921
    %v924 = vadd.f32 %v916, %v921
    %s925 = scalar_lea.vmem [#allocation8], 64
    %v926 = vld [vmem:[%s925] sm:$0xf]
    %v927 = vld [vmem:[%s925 + $0x4] sm:$0xf]
    %v928 = vld [vmem:[%s925 + $0x8] sm:$0xf]
    %v929 = vld [vmem:[%s925 + $0xc] sm:$0xf]
    %v930 = vld [vmem:[%s925 + $0x10] sm:$0xf]
    %v931 = vld [vmem:[%s925 + $0x14] sm:$0xf]
    %v932 = vld [vmem:[%s925 + $0x18] sm:$0xf]
    %v933 = vld [vmem:[%s925 + $0x1c] sm:$0xf]
    %v934 = vld [vmem:[%s925 + $0x20] sm:$0xf]
    %v935 = vld [vmem:[%s925 + $0x24] sm:$0xf]
    %v936 = vld [vmem:[%s925 + $0x28] sm:$0xf]
    %v937 = vld [vmem:[%s925 + $0x2c] sm:$0xf]
    %v938 = vld [vmem:[%s925 + $0x30] sm:$0xf]
    %v939 = vld [vmem:[%s925 + $0x34] sm:$0xf]
    %v940 = vld [vmem:[%s925 + $0x38] sm:$0xf]
    %v941 = vld [vmem:[%s925 + $0x3c] sm:$0xf]
    %v942 = vpack.c.bf16 %v924, %v923
    %s943 = scalar_lea.vmem [#allocation10], 1
    %v944 = vld [vmem:[%s943] sm:$0x1]
    %v946 = vlaneseq
    %v947 = vshrl.u32 %v946, 7
    %v948 = vsub.s32 0, %v947
    %v949 = vrot.slane %v944, %v948
    %v967 = vunpack.c.l.b16 %v926
    %v968 = vunpack.c.l.b16 %v927
    %v969 = vunpack.c.l.b16 %v928
    %v970 = vunpack.c.l.b16 %v929
    %v971 = vunpack.c.l.b16 %v930
    %v972 = vunpack.c.l.b16 %v931
    %v973 = vunpack.c.l.b16 %v932
    %v974 = vunpack.c.l.b16 %v933
    %v975 = vunpack.c.l.b16 %v934
    %v976 = vunpack.c.l.b16 %v935
    %v977 = vunpack.c.l.b16 %v936
    %v978 = vunpack.c.l.b16 %v937
    %v979 = vunpack.c.l.b16 %v938
    %v980 = vunpack.c.l.b16 %v939
    %v981 = vunpack.c.l.b16 %v940
    %v982 = vunpack.c.l.b16 %v941
    %v983 = vpack.c.b16 %v968, %v967
    %v984 = vpack.c.b16 %v970, %v969
    %v985 = vpack.c.b16 %v972, %v971
    %v986 = vpack.c.b16 %v974, %v973
    %v987 = vpack.c.b16 %v976, %v975
    %v988 = vpack.c.b16 %v978, %v977
    %v989 = vpack.c.b16 %v980, %v979
    %v990 = vpack.c.b16 %v982, %v981
    %999 = vmatprep.subr.bf16.mxu0 0
    %1000 = vmatpush1.bf16.msra.mxu0 %v983
    %1001 = vmatprep.subr.bf16.mxu0 0
    %1002 = vmatpush1.bf16.msra.mxu0 %v984
    %1003 = vmatprep.subr.bf16.mxu0 0
    %1004 = vmatpush1.bf16.msra.mxu0 %v985
    %1005 = vmatprep.subr.bf16.mxu0 0
    %1006 = vmatpush1.bf16.msra.mxu0 %v986
    %1007 = vmatprep.subr.bf16.mxu0 0
    %1008 = vmatpush1.bf16.msra.mxu0 %v987
    %1009 = vmatprep.subr.bf16.mxu0 0
    %1010 = vmatpush1.bf16.msra.mxu0 %v988
    %1011 = vmatprep.subr.bf16.mxu0 0
    %1012 = vmatpush1.bf16.msra.mxu0 %v989
    %1013 = vmatprep.subr.bf16.mxu0 0
    %1014 = vmatpush1.bf16.msra.mxu0 %v990
    %1015 = vmatprep.subr.bf16.mxu0 0
    %1016 = vmatpush1.bf16.msra.mxu0 0
    %1017 = vmatprep.subr.bf16.mxu0 0
    %1018 = vmatpush1.bf16.msra.mxu0 0
    %1019 = vmatprep.subr.bf16.mxu0 0
    %1020 = vmatpush1.bf16.msra.mxu0 0
    %1021 = vmatprep.subr.bf16.mxu0 0
    %1022 = vmatpush1.bf16.msra.mxu0 0
    %1023 = vmatprep.subr.bf16.mxu0 0
    %1024 = vmatpush1.bf16.msra.mxu0 0
    %1025 = vmatprep.subr.bf16.mxu0 0
    %1026 = vmatpush1.bf16.msra.mxu0 0
    %1027 = vmatprep.subr.bf16.mxu0 0
    %1028 = vmatpush1.bf16.msra.mxu0 0
    %1029 = vmatprep.subr.bf16.mxu0 0
    %1030 = vmatpush1.bf16.msra.mxu0 0
    %1031 = vmatprep.mubr.bf16.mxu0 0
    %1032 = vmatmul.mubr.bf16.gmra.mrb[0].mxu0 %v942
    %v1033 = vpop.f32.mrb[0].mxu0
    %v1034 = vadd.f32 %v949, %v1033
    %v1035 = vpop.f32.mrb[0].mxu0
    %v1036 = vpop.f32.mrb[0].mxu0
    %v1037 = vadd.f32 %v949, %v1036
    %v1038 = vpop.f32.mrb[0].mxu0
    %1039 = vdwg.mxu0
    %s1040 = scalar_lea.vmem [#allocation11], 64
    %v1041 = vld [vmem:[%s1040] sm:$0xf]
    %v1042 = vld [vmem:[%s1040 + $0x4] sm:$0xf]
    %v1043 = vld [vmem:[%s1040 + $0x8] sm:$0xf]
    %v1044 = vld [vmem:[%s1040 + $0xc] sm:$0xf]
    %v1045 = vld [vmem:[%s1040 + $0x10] sm:$0xf]
    %v1046 = vld [vmem:[%s1040 + $0x14] sm:$0xf]
    %v1047 = vld [vmem:[%s1040 + $0x18] sm:$0xf]
    %v1048 = vld [vmem:[%s1040 + $0x1c] sm:$0xf]
    %v1049 = vld [vmem:[%s1040 + $0x20] sm:$0xf]
    %v1050 = vld [vmem:[%s1040 + $0x24] sm:$0xf]
    %v1051 = vld [vmem:[%s1040 + $0x28] sm:$0xf]
    %v1052 = vld [vmem:[%s1040 + $0x2c] sm:$0xf]
    %v1053 = vld [vmem:[%s1040 + $0x30] sm:$0xf]
    %v1054 = vld [vmem:[%s1040 + $0x34] sm:$0xf]
    %v1055 = vld [vmem:[%s1040 + $0x38] sm:$0xf]
    %v1056 = vld [vmem:[%s1040 + $0x3c] sm:$0xf]
    %v1057 = vpack.c.bf16 %v1037, %v1034
    %s1058 = scalar_lea.vmem [#allocation13], 1
    %v1059 = vld [vmem:[%s1058] sm:$0x1]
    %v1061 = vlaneseq
    %v1062 = vshrl.u32 %v1061, 7
    %v1063 = vsub.s32 0, %v1062
    %v1064 = vrot.slane %v1059, %v1063
    %v1082 = vunpack.c.l.b16 %v1041
    %v1083 = vunpack.c.l.b16 %v1042
    %v1084 = vunpack.c.l.b16 %v1043
    %v1085 = vunpack.c.l.b16 %v1044
    %v1086 = vunpack.c.l.b16 %v1045
    %v1087 = vunpack.c.l.b16 %v1046
    %v1088 = vunpack.c.l.b16 %v1047
    %v1089 = vunpack.c.l.b16 %v1048
    %v1090 = vunpack.c.l.b16 %v1049
    %v1091 = vunpack.c.l.b16 %v1050
    %v1092 = vunpack.c.l.b16 %v1051
    %v1093 = vunpack.c.l.b16 %v1052
    %v1094 = vunpack.c.l.b16 %v1053
    %v1095 = vunpack.c.l.b16 %v1054
    %v1096 = vunpack.c.l.b16 %v1055
    %v1097 = vunpack.c.l.b16 %v1056
    %v1098 = vpack.c.b16 %v1083, %v1082
    %v1099 = vpack.c.b16 %v1085, %v1084
    %v1100 = vpack.c.b16 %v1087, %v1086
    %v1101 = vpack.c.b16 %v1089, %v1088
    %v1102 = vpack.c.b16 %v1091, %v1090
    %v1103 = vpack.c.b16 %v1093, %v1092
    %v1104 = vpack.c.b16 %v1095, %v1094
    %v1105 = vpack.c.b16 %v1097, %v1096
    %1114 = vmatprep.subr.bf16.mxu0 0
    %1115 = vmatpush1.bf16.msra.mxu0 %v1098
    %1116 = vmatprep.subr.bf16.mxu0 0
    %1117 = vmatpush1.bf16.msra.mxu0 %v1099
    %1118 = vmatprep.subr.bf16.mxu0 0
    %1119 = vmatpush1.bf16.msra.mxu0 %v1100
    %1120 = vmatprep.subr.bf16.mxu0 0
    %1121 = vmatpush1.bf16.msra.mxu0 %v1101
    %1122 = vmatprep.subr.bf16.mxu0 0
    %1123 = vmatpush1.bf16.msra.mxu0 %v1102
    %1124 = vmatprep.subr.bf16.mxu0 0
    %1125 = vmatpush1.bf16.msra.mxu0 %v1103
    %1126 = vmatprep.subr.bf16.mxu0 0
    %1127 = vmatpush1.bf16.msra.mxu0 %v1104
    %1128 = vmatprep.subr.bf16.mxu0 0
    %1129 = vmatpush1.bf16.msra.mxu0 %v1105
    %1130 = vmatprep.subr.bf16.mxu0 0
    %1131 = vmatpush1.bf16.msra.mxu0 0
    %1132 = vmatprep.subr.bf16.mxu0 0
    %1133 = vmatpush1.bf16.msra.mxu0 0
    %1134 = vmatprep.subr.bf16.mxu0 0
    %1135 = vmatpush1.bf16.msra.mxu0 0
    %1136 = vmatprep.subr.bf16.mxu0 0
    %1137 = vmatpush1.bf16.msra.mxu0 0
    %1138 = vmatprep.subr.bf16.mxu0 0
    %1139 = vmatpush1.bf16.msra.mxu0 0
    %1140 = vmatprep.subr.bf16.mxu0 0
    %1141 = vmatpush1.bf16.msra.mxu0 0
    %1142 = vmatprep.subr.bf16.mxu0 0
    %1143 = vmatpush1.bf16.msra.mxu0 0
    %1144 = vmatprep.subr.bf16.mxu0 0
    %1145 = vmatpush1.bf16.msra.mxu0 0
    %1146 = vmatprep.mubr.bf16.mxu0 0
    %1147 = vmatmul.mubr.bf16.gmra.mrb[0].mxu0 %v1057
    %v1148 = vpop.f32.mrb[0].mxu0
    %v1149 = vadd.f32 %v1064, %v1148
    %v1150 = vpop.f32.mrb[0].mxu0
    %v1151 = vpop.f32.mrb[0].mxu0
    %v1152 = vadd.f32 %v1064, %v1151
    %v1153 = vpop.f32.mrb[0].mxu0
    %1154 = vdwg.mxu0
    %v1155 = vadd.f32 %v923, %v1149
    %v1156 = vadd.f32 %v924, %v1152
    %s1157 = scalar_lea.vmem [#allocation14], 1
    %v1158 = vld [vmem:[%s1157] sm:$0x1]
    %s1159 = scalar_lea.vmem [#allocation16], 1
    %v1160 = vld [vmem:[%s1159] sm:$0x1]
    %1161 = vadd.xlane.f32.xlu0 %v1155
    %v1162 = vpop.xlane.xlu0 %1161
    %1163 = vadd.xlane.f32.xlu0 %v1156
    %v1164 = vpop.xlane.xlu0 %1163
    %v1165 = vmul.f32 %v1155, %v1155
    %v1166 = vmul.f32 %v1156, %v1156
    %1167 = vadd.xlane.f32.xlu0 %v1165
    %v1168 = vpop.xlane.xlu0 %1167
    %1169 = vadd.xlane.f32.xlu0 %v1166
    %v1170 = vpop.xlane.xlu0 %1169
    %v1171 = vmul.f32 %v1162, 0.03125
    %v1172 = vmul.f32 %v1164, 0.03125
    %v1173 = vmul.f32 %v1168, 0.03125
    %v1174 = vmul.f32 %v1170, 0.03125
    %v1175 = vmul.f32 %v1171, %v1171
    %v1176 = vmul.f32 %v1172, %v1172
    %v1177 = vsub.f32 %v1173, %v1175
    %v1178 = vsub.f32 %v1174, %v1176
    %v1179 = vadd.f32 %v1177, 1e-05
    %v1180 = vadd.f32 %v1178, 1e-05
    %v1181 = vrsqrt.pop %v1179
    %v1182 = vrsqrt.pop %v1180
    %v1183 = vsub.f32 %v1155, %v1171
    %v1184 = vsub.f32 %v1156, %v1172
    %v1185 = vmul.f32 %v1183, %v1181
    %v1186 = vmul.f32 %v1184, %v1182
    %v1188 = vlaneseq
    %v1189 = vshrl.u32 %v1188, 7
    %v1190 = vsub.s32 0, %v1189
    %v1191 = vrot.slane %v1158, %v1190
    %v1193 = vmul.f32 %v1185, %v1191
    %v1194 = vmul.f32 %v1186, %v1191
    %v1196 = vlaneseq
    %v1197 = vshrl.u32 %v1196, 7
    %v1198 = vsub.s32 0, %v1197
    %v1199 = vrot.slane %v1160, %v1198
    %v1201 = vadd.f32 %v1193, %v1199
    %v1202 = vadd.f32 %v1194, %v1199
    %s1203 = scalar_lea.vmem [#allocation17], 64
    %v1204 = vld [vmem:[%s1203] sm:$0xf]
    %v1205 = vld [vmem:[%s1203 + $0x4] sm:$0xf]
    %v1206 = vld [vmem:[%s1203 + $0x8] sm:$0xf]
    %v1207 = vld [vmem:[%s1203 + $0xc] sm:$0xf]
    %v1208 = vld [vmem:[%s1203 + $0x10] sm:$0xf]
    %v1209 = vld [vmem:[%s1203 + $0x14] sm:$0xf]
    %v1210 = vld [vmem:[%s1203 + $0x18] sm:$0xf]
    %v1211 = vld [vmem:[%s1203 + $0x1c] sm:$0xf]
    %v1212 = vld [vmem:[%s1203 + $0x20] sm:$0xf]
    %v1213 = vld [vmem:[%s1203 + $0x24] sm:$0xf]
    %v1214 = vld [vmem:[%s1203 + $0x28] sm:$0xf]
    %v1215 = vld [vmem:[%s1203 + $0x2c] sm:$0xf]
    %v1216 = vld [vmem:[%s1203 + $0x30] sm:$0xf]
    %v1217 = vld [vmem:[%s1203 + $0x34] sm:$0xf]
    %v1218 = vld [vmem:[%s1203 + $0x38] sm:$0xf]
    %v1219 = vld [vmem:[%s1203 + $0x3c] sm:$0xf]
    %v1220 = vpack.c.bf16 %v1202, %v1201
    %s1221 = scalar_lea.vmem [#allocation19], 1
    %v1222 = vld [vmem:[%s1221] sm:$0x1]
    %v1224 = vlaneseq
    %v1225 = vshrl.u32 %v1224, 7
    %v1226 = vsub.s32 0, %v1225
    %v1227 = vrot.slane %v1222, %v1226
    %v1245 = vunpack.c.l.b16 %v1204
    %v1246 = vunpack.c.l.b16 %v1205
    %v1247 = vunpack.c.l.b16 %v1206
    %v1248 = vunpack.c.l.b16 %v1207
    %v1249 = vunpack.c.l.b16 %v1208
    %v1250 = vunpack.c.l.b16 %v1209
    %v1251 = vunpack.c.l.b16 %v1210
    %v1252 = vunpack.c.l.b16 %v1211
    %v1253 = vunpack.c.l.b16 %v1212
    %v1254 = vunpack.c.l.b16 %v1213
    %v1255 = vunpack.c.l.b16 %v1214
    %v1256 = vunpack.c.l.b16 %v1215
    %v1257 = vunpack.c.l.b16 %v1216
    %v1258 = vunpack.c.l.b16 %v1217
    %v1259 = vunpack.c.l.b16 %v1218
    %v1260 = vunpack.c.l.b16 %v1219
    %v1261 = vpack.c.b16 %v1246, %v1245
    %v1262 = vpack.c.b16 %v1248, %v1247
    %v1263 = vpack.c.b16 %v1250, %v1249
    %v1264 = vpack.c.b16 %v1252, %v1251
    %v1265 = vpack.c.b16 %v1254, %v1253
    %v1266 = vpack.c.b16 %v1256, %v1255
    %v1267 = vpack.c.b16 %v1258, %v1257
    %v1268 = vpack.c.b16 %v1260, %v1259
    %1277 = vmatprep.subr.bf16.mxu0 0
    %1278 = vmatpush1.bf16.msra.mxu0 %v1261
    %1279 = vmatprep.subr.bf16.mxu0 0
    %1280 = vmatpush1.bf16.msra.mxu0 %v1262
    %1281 = vmatprep.subr.bf16.mxu0 0
    %1282 = vmatpush1.bf16.msra.mxu0 %v1263
    %1283 = vmatprep.subr.bf16.mxu0 0
    %1284 = vmatpush1.bf16.msra.mxu0 %v1264
    %1285 = vmatprep.subr.bf16.mxu0 0
    %1286 = vmatpush1.bf16.msra.mxu0 %v1265
    %1287 = vmatprep.subr.bf16.mxu0 0
    %1288 = vmatpush1.bf16.msra.mxu0 %v1266
    %1289 = vmatprep.subr.bf16.mxu0 0
    %1290 = vmatpush1.bf16.msra.mxu0 %v1267
    %1291 = vmatprep.subr.bf16.mxu0 0
    %1292 = vmatpush1.bf16.msra.mxu0 %v1268
    %1293 = vmatprep.subr.bf16.mxu0 0
    %1294 = vmatpush1.bf16.msra.mxu0 0
    %1295 = vmatprep.subr.bf16.mxu0 0
    %1296 = vmatpush1.bf16.msra.mxu0 0
    %1297 = vmatprep.subr.bf16.mxu0 0
    %1298 = vmatpush1.bf16.msra.mxu0 0
    %1299 = vmatprep.subr.bf16.mxu0 0
    %1300 = vmatpush1.bf16.msra.mxu0 0
    %1301 = vmatprep.subr.bf16.mxu0 0
    %1302 = vmatpush1.bf16.msra.mxu0 0
    %1303 = vmatprep.subr.bf16.mxu0 0
    %1304 = vmatpush1.bf16.msra.mxu0 0
    %1305 = vmatprep.subr.bf16.mxu0 0
    %1306 = vmatpush1.bf16.msra.mxu0 0
    %1307 = vmatprep.subr.bf16.mxu0 0
    %1308 = vmatpush1.bf16.msra.mxu0 0
    %1309 = vmatprep.mubr.bf16.mxu0 0
    %1310 = vmatmul.mubr.bf16.gmra.mrb[0].mxu0 %v1220
    %v1311 = vpop.f32.mrb[0].mxu0
    %v1312 = vadd.f32 %v1227, %v1311
    %v1313 = vpop.f32.mrb[0].mxu0
    %v1314 = vpop.f32.mrb[0].mxu0
    %v1315 = vadd.f32 %v1227, %v1314
    %v1316 = vpop.f32.mrb[0].mxu0
    %1317 = vdwg.mxu0
    %v1318 = vmul.f32 %v1312, 0.5
    %v1319 = vmul.f32 %v1315, 0.5
    %v1320 = vmul.f32 %v1312, 0.70710677
    %v1321 = vmul.f32 %v1315, 0.70710677
    %v1322 = verf.f32.pop %v1320
    %v1323 = verf.f32.pop %v1321
    %v1324 = vadd.f32 %v1322, 1.0
    %v1325 = vadd.f32 %v1323, 1.0
    %v1326 = vmul.f32 %v1318, %v1324
    %v1327 = vmul.f32 %v1319, %v1325
    %s1328 = scalar_lea.vmem [#allocation20], 64
    %v1329 = vld [vmem:[%s1328] sm:$0xf]
    %v1330 = vld [vmem:[%s1328 + $0x4] sm:$0xf]
    %v1331 = vld [vmem:[%s1328 + $0x8] sm:$0xf]
    %v1332 = vld [vmem:[%s1328 + $0xc] sm:$0xf]
    %v1333 = vld [vmem:[%s1328 + $0x10] sm:$0xf]
    %v1334 = vld [vmem:[%s1328 + $0x14] sm:$0xf]
    %v1335 = vld [vmem:[%s1328 + $0x18] sm:$0xf]
    %v1336 = vld [vmem:[%s1328 + $0x1c] sm:$0xf]
    %v1337 = vld [vmem:[%s1328 + $0x20] sm:$0xf]
    %v1338 = vld [vmem:[%s1328 + $0x24] sm:$0xf]
    %v1339 = vld [vmem:[%s1328 + $0x28] sm:$0xf]
    %v1340 = vld [vmem:[%s1328 + $0x2c] sm:$0xf]
    %v1341 = vld [vmem:[%s1328 + $0x30] sm:$0xf]
    %v1342 = vld [vmem:[%s1328 + $0x34] sm:$0xf]
    %v1343 = vld [vmem:[%s1328 + $0x38] sm:$0xf]
    %v1344 = vld [vmem:[%s1328 + $0x3c] sm:$0xf]
    %v1345 = vpack.c.bf16 %v1327, %v1326
    %s1346 = scalar_lea.vmem [#allocation22], 1
    %v1347 = vld [vmem:[%s1346] sm:$0x1]
    %v1349 = vlaneseq
    %v1350 = vshrl.u32 %v1349, 7
    %v1351 = vsub.s32 0, %v1350
    %v1352 = vrot.slane %v1347, %v1351
    %v1370 = vunpack.c.l.b16 %v1329
    %v1371 = vunpack.c.l.b16 %v1330
    %v1372 = vunpack.c.l.b16 %v1331
    %v1373 = vunpack.c.l.b16 %v1332
    %v1374 = vunpack.c.l.b16 %v1333
    %v1375 = vunpack.c.l.b16 %v1334
    %v1376 = vunpack.c.l.b16 %v1335
    %v1377 = vunpack.c.l.b16 %v1336
    %v1378 = vunpack.c.l.b16 %v1337
    %v1379 = vunpack.c.l.b16 %v1338
    %v1380 = vunpack.c.l.b16 %v1339
    %v1381 = vunpack.c.l.b16 %v1340
    %v1382 = vunpack.c.l.b16 %v1341
    %v1383 = vunpack.c.l.b16 %v1342
    %v1384 = vunpack.c.l.b16 %v1343
    %v1385 = vunpack.c.l.b16 %v1344
    %v1386 = vpack.c.b16 %v1371, %v1370
    %v1387 = vpack.c.b16 %v1373, %v1372
    %v1388 = vpack.c.b16 %v1375, %v1374
    %v1389 = vpack.c.b16 %v1377, %v1376
    %v1390 = vpack.c.b16 %v1379, %v1378
    %v1391 = vpack.c.b16 %v1381, %v1380
    %v1392 = vpack.c.b16 %v1383, %v1382
    %v1393 = vpack.c.b16 %v1385, %v1384
    %1402 = vmatprep.subr.bf16.mxu0 0
    %1403 = vmatpush1.bf16.msra.mxu0 %v1386
    %1404 = vmatprep.subr.bf16.mxu0 0
    %1405 = vmatpush1.bf16.msra.mxu0 %v1387
    %1406 = vmatprep.subr.bf16.mxu0 0
    %1407 = vmatpush1.bf16.msra.mxu0 %v1388
    %1408 = vmatprep.subr.bf16.mxu0 0
    %1409 = vmatpush1.bf16.msra.mxu0 %v1389
    %1410 = vmatprep.subr.bf16.mxu0 0
    %1411 = vmatpush1.bf16.msra.mxu0 %v1390
    %1412 = vmatprep.subr.bf16.mxu0 0
    %1413 = vmatpush1.bf16.msra.mxu0 %v1391
    %1414 = vmatprep.subr.bf16.mxu0 0
    %1415 = vmatpush1.bf16.msra.mxu0 %v1392
    %1416 = vmatprep.subr.bf16.mxu0 0
    %1417 = vmatpush1.bf16.msra.mxu0 %v1393
    %1418 = vmatprep.subr.bf16.mxu0 0
    %1419 = vmatpush1.bf16.msra.mxu0 0
    %1420 = vmatprep.subr.bf16.mxu0 0
    %1421 = vmatpush1.bf16.msra.mxu0 0
    %1422 = vmatprep.subr.bf16.mxu0 0
    %1423 = vmatpush1.bf16.msra.mxu0 0
    %1424 = vmatprep.subr.bf16.mxu0 0
    %1425 = vmatpush1.bf16.msra.mxu0 0
    %1426 = vmatprep.subr.bf16.mxu0 0
    %1427 = vmatpush1.bf16.msra.mxu0 0
    %1428 = vmatprep.subr.bf16.mxu0 0
    %1429 = vmatpush1.bf16.msra.mxu0 0
    %1430 = vmatprep.subr.bf16.mxu0 0
    %1431 = vmatpush1.bf16.msra.mxu0 0
    %1432 = vmatprep.subr.bf16.mxu0 0
    %1433 = vmatpush1.bf16.msra.mxu0 0
    %1434 = vmatprep.mubr.bf16.mxu0 0
    %1435 = vmatmul.mubr.bf16.gmra.mrb[0].mxu0 %v1345
    %v1436 = vpop.f32.mrb[0].mxu0
    %v1437 = vadd.f32 %v1352, %v1436
    %v1438 = vpop.f32.mrb[0].mxu0
    %v1439 = vpop.f32.mrb[0].mxu0
    %v1440 = vadd.f32 %v1352, %v1439
    %v1441 = vpop.f32.mrb[0].mxu0
    %1442 = vdwg.mxu0
    %v1443 = vadd.f32 %v1201, %v1437
    %v1444 = vadd.f32 %v1202, %v1440
    %s1445 = scalar_lea.vmem [#allocation23], 1
    %v1446 = vld [vmem:[%s1445] sm:$0x1]
    %s1447 = scalar_lea.vmem [#allocation25], 1
    %v1448 = vld [vmem:[%s1447] sm:$0x1]
    %1449 = vadd.xlane.f32.xlu0 %v1443
    %v1450 = vpop.xlane.xlu0 %1449
    %1451 = vadd.xlane.f32.xlu0 %v1444
    %v1452 = vpop.xlane.xlu0 %1451
    %v1453 = vmul.f32 %v1443, %v1443
    %v1454 = vmul.f32 %v1444, %v1444
    %1455 = vadd.xlane.f32.xlu0 %v1453
    %v1456 = vpop.xlane.xlu0 %1455
    %1457 = vadd.xlane.f32.xlu0 %v1454
    %v1458 = vpop.xlane.xlu0 %1457
    %v1459 = vmul.f32 %v1450, 0.03125
    %v1460 = vmul.f32 %v1452, 0.03125
    %v1461 = vmul.f32 %v1456, 0.03125
    %v1462 = vmul.f32 %v1458, 0.03125
    %v1463 = vmul.f32 %v1459, %v1459
    %v1464 = vmul.f32 %v1460, %v1460
    %v1465 = vsub.f32 %v1461, %v1463
    %v1466 = vsub.f32 %v1462, %v1464
    %v1467 = vadd.f32 %v1465, 1e-05
    %v1468 = vadd.f32 %v1466, 1e-05
    %v1469 = vrsqrt.pop %v1467
    %v1470 = vrsqrt.pop %v1468
    %v1471 = vsub.f32 %v1443, %v1459
    %v1472 = vsub.f32 %v1444, %v1460
    %v1473 = vmul.f32 %v1471, %v1469
    %v1474 = vmul.f32 %v1472, %v1470
    %v1476 = vlaneseq
    %v1477 = vshrl.u32 %v1476, 7
    %v1478 = vsub.s32 0, %v1477
    %v1479 = vrot.slane %v1446, %v1478
    %v1481 = vmul.f32 %v1473, %v1479
    %v1482 = vmul.f32 %v1474, %v1479
    %v1484 = vlaneseq
    %v1485 = vshrl.u32 %v1484, 7
    %v1486 = vsub.s32 0, %v1485
    %v1487 = vrot.slane %v1448, %v1486
    %v1489 = vadd.f32 %v1481, %v1487
    %v1490 = vadd.f32 %v1482, %v1487
    %v1491 = vld [vmem:[#allocation26] sm:$0x1]
    %v1492 = vld [vmem:[#allocation28] sm:$0x1]
    %1493 = vadd.xlane.f32.xlu0 %v1489
    %v1494 = vpop.xlane.xlu0 %1493
    %1495 = vadd.xlane.f32.xlu0 %v1490
    %v1496 = vpop.xlane.xlu0 %1495
    %v1497 = vmul.f32 %v1489, %v1489
    %v1498 = vmul.f32 %v1490, %v1490
    %1499 = vadd.xlane.f32.xlu0 %v1497
    %v1500 = vpop.xlane.xlu0 %1499
    %1501 = vadd.xlane.f32.xlu0 %v1498
    %v1502 = vpop.xlane.xlu0 %1501
    %v1503 = vmul.f32 %v1494, 0.03125
    %v1504 = vmul.f32 %v1496, 0.03125
    %v1505 = vmul.f32 %v1500, 0.03125
    %v1506 = vmul.f32 %v1502, 0.03125
    %v1507 = vmul.f32 %v1503, %v1503
    %v1508 = vmul.f32 %v1504, %v1504
    %v1509 = vsub.f32 %v1505, %v1507
    %v1510 = vsub.f32 %v1506, %v1508
    %v1511 = vadd.f32 %v1509, 1e-05
    %v1512 = vadd.f32 %v1510, 1e-05
    %v1513 = vrsqrt.pop %v1511
    %v1514 = vrsqrt.pop %v1512
    %v1515 = vsub.f32 %v1489, %v1503
    %v1516 = vsub.f32 %v1490, %v1504
    %v1517 = vmul.f32 %v1515, %v1513
    %v1518 = vmul.f32 %v1516, %v1514
    %v1520 = vlaneseq
    %v1521 = vshrl.u32 %v1520, 7
    %v1522 = vsub.s32 0, %v1521
    %v1523 = vrot.slane %v1491, %v1522
    %v1525 = vmul.f32 %v1517, %v1523
    %v1526 = vmul.f32 %v1518, %v1523
    %v1528 = vlaneseq
    %v1529 = vshrl.u32 %v1528, 7
    %v1530 = vsub.s32 0, %v1529
    %v1531 = vrot.slane %v1492, %v1530
    %v1533 = vadd.f32 %v1525, %v1531
    %v1534 = vadd.f32 %v1526, %v1531
    %v1535 = vld [vmem:[%s17] sm:$0xf]
    %v1536 = vld [vmem:[%s17 + $0x4] sm:$0xf]
    %v1537 = vld [vmem:[%s17 + $0x8] sm:$0xf]
    %v1538 = vld [vmem:[%s17 + $0xc] sm:$0xf]
    %v1539 = vld [vmem:[%s17 + $0x10] sm:$0xf]
    %v1540 = vld [vmem:[%s17 + $0x14] sm:$0xf]
    %v1541 = vld [vmem:[%s17 + $0x18] sm:$0xf]
    %v1542 = vld [vmem:[%s17 + $0x1c] sm:$0xf]
    %v1543 = vld [vmem:[%s17 + $0x20] sm:$0xf]
    %v1544 = vld [vmem:[%s17 + $0x24] sm:$0xf]
    %v1545 = vld [vmem:[%s17 + $0x28] sm:$0xf]
    %v1546 = vld [vmem:[%s17 + $0x2c] sm:$0xf]
    %v1547 = vld [vmem:[%s17 + $0x30] sm:$0xf]
    %v1548 = vld [vmem:[%s17 + $0x34] sm:$0xf]
    %v1549 = vld [vmem:[%s17 + $0x38] sm:$0xf]
    %v1550 = vld [vmem:[%s17 + $0x3c] sm:$0xf]
    %v1551 = vpack.c.bf16 %v1534, %v1533
    %v1552 = vld [vmem:[%s18] sm:$0x1]
    %v1554 = vlaneseq
    %v1555 = vshrl.u32 %v1554, 7
    %v1556 = vsub.s32 0, %v1555
    %v1557 = vrot.slane %v1552, %v1556
    %v1575 = vunpack.c.l.b16 %v1535
    %v1576 = vunpack.c.l.b16 %v1536
    %v1577 = vunpack.c.l.b16 %v1537
    %v1578 = vunpack.c.l.b16 %v1538
    %v1579 = vunpack.c.l.b16 %v1539
    %v1580 = vunpack.c.l.b16 %v1540
    %v1581 = vunpack.c.l.b16 %v1541
    %v1582 = vunpack.c.l.b16 %v1542
    %v1583 = vunpack.c.l.b16 %v1543
    %v1584 = vunpack.c.l.b16 %v1544
    %v1585 = vunpack.c.l.b16 %v1545
    %v1586 = vunpack.c.l.b16 %v1546
    %v1587 = vunpack.c.l.b16 %v1547
    %v1588 = vunpack.c.l.b16 %v1548
    %v1589 = vunpack.c.l.b16 %v1549
    %v1590 = vunpack.c.l.b16 %v1550
    %v1591 = vpack.c.b16 %v1576, %v1575
    %v1592 = vpack.c.b16 %v1578, %v1577
    %v1593 = vpack.c.b16 %v1580, %v1579
    %v1594 = vpack.c.b16 %v1582, %v1581
    %v1595 = vpack.c.b16 %v1584, %v1583
    %v1596 = vpack.c.b16 %v1586, %v1585
    %v1597 = vpack.c.b16 %v1588, %v1587
    %v1598 = vpack.c.b16 %v1590, %v1589
    %1607 = vmatprep.subr.bf16.mxu0 0
    %1608 = vmatpush1.bf16.msra.mxu0 %v1591
    %1609 = vmatprep.subr.bf16.mxu0 0
    %1610 = vmatpush1.bf16.msra.mxu0 %v1592
    %1611 = vmatprep.subr.bf16.mxu0 0
    %1612 = vmatpush1.bf16.msra.mxu0 %v1593
    %1613 = vmatprep.subr.bf16.mxu0 0
    %1614 = vmatpush1.bf16.msra.mxu0 %v1594
    %1615 = vmatprep.subr.bf16.mxu0 0
    %1616 = vmatpush1.bf16.msra.mxu0 %v1595
    %1617 = vmatprep.subr.bf16.mxu0 0
    %1618 = vmatpush1.bf16.msra.mxu0 %v1596
    %1619 = vmatprep.subr.bf16.mxu0 0
    %1620 = vmatpush1.bf16.msra.mxu0 %v1597
    %1621 = vmatprep.subr.bf16.mxu0 0
    %1622 = vmatpush1.bf16.msra.mxu0 %v1598
    %1623 = vmatprep.subr.bf16.mxu0 0
    %1624 = vmatpush1.bf16.msra.mxu0 0
    %1625 = vmatprep.subr.bf16.mxu0 0
    %1626 = vmatpush1.bf16.msra.mxu0 0
    %1627 = vmatprep.subr.bf16.mxu0 0
    %1628 = vmatpush1.bf16.msra.mxu0 0
    %1629 = vmatprep.subr.bf16.mxu0 0
    %1630 = vmatpush1.bf16.msra.mxu0 0
    %1631 = vmatprep.subr.bf16.mxu0 0
    %1632 = vmatpush1.bf16.msra.mxu0 0
    %1633 = vmatprep.subr.bf16.mxu0 0
    %1634 = vmatpush1.bf16.msra.mxu0 0
    %1635 = vmatprep.subr.bf16.mxu0 0
    %1636 = vmatpush1.bf16.msra.mxu0 0
    %1637 = vmatprep.subr.bf16.mxu0 0
    %1638 = vmatpush1.bf16.msra.mxu0 0
    %1639 = vmatprep.mubr.bf16.mxu0 0
    %1640 = vmatmul.mubr.bf16.gmra.mrb[0].mxu0 %v1551
    %v1641 = vpop.f32.mrb[0].mxu0
    %v1642 = vadd.f32 %v1557, %v1641
    %v1643 = vpop.f32.mrb[0].mxu0
    %v1644 = vpop.f32.mrb[0].mxu0
    %v1645 = vadd.f32 %v1557, %v1644
    %v1646 = vpop.f32.mrb[0].mxu0
    %1647 = vdwg.mxu0
    %v1648 = vmul.f32 %v1642, 0.5
    %v1649 = vmul.f32 %v1645, 0.5
    %v1650 = vmul.f32 %v1642, 0.70710677
    %v1651 = vmul.f32 %v1645, 0.70710677
    %v1652 = verf.f32.pop %v1650
    %v1653 = verf.f32.pop %v1651
    %v1654 = vadd.f32 %v1652, 1.0
    %v1655 = vadd.f32 %v1653, 1.0
    %v1656 = vmul.f32 %v1648, %v1654
    %v1657 = vmul.f32 %v1649, %v1655
    %v1658 = vld [vmem:[#allocation29] sm:$0xf]
    %v1659 = vld [vmem:[#allocation29 + $0x4] sm:$0xf]
    %v1660 = vld [vmem:[#allocation29 + $0x8] sm:$0xf]
    %v1661 = vld [vmem:[#allocation29 + $0xc] sm:$0xf]
    %v1662 = vld [vmem:[#allocation29 + $0x10] sm:$0xf]
    %v1663 = vld [vmem:[#allocation29 + $0x14] sm:$0xf]
    %v1664 = vld [vmem:[#allocation29 + $0x18] sm:$0xf]
    %v1665 = vld [vmem:[#allocation29 + $0x1c] sm:$0xf]
    %v1666 = vld [vmem:[#allocation29 + $0x20] sm:$0xf]
    %v1667 = vld [vmem:[#allocation29 + $0x24] sm:$0xf]
    %v1668 = vld [vmem:[#allocation29 + $0x28] sm:$0xf]
    %v1669 = vld [vmem:[#allocation29 + $0x2c] sm:$0xf]
    %v1670 = vld [vmem:[#allocation29 + $0x30] sm:$0xf]
    %v1671 = vld [vmem:[#allocation29 + $0x34] sm:$0xf]
    %v1672 = vld [vmem:[#allocation29 + $0x38] sm:$0xf]
    %v1673 = vld [vmem:[#allocation29 + $0x3c] sm:$0xf]
    %v1674 = vpack.c.bf16 %v1657, %v1656
    %v1675 = vld [vmem:[%s20] sm:$0x1]
    %v1677 = vlaneseq
    %v1678 = vshrl.u32 %v1677, 7
    %v1679 = vsub.s32 0, %v1678
    %v1680 = vrot.slane %v1675, %v1679
    %v1698 = vunpack.c.l.b16 %v1658
    %v1699 = vunpack.c.l.b16 %v1659
    %v1700 = vunpack.c.l.b16 %v1660
    %v1701 = vunpack.c.l.b16 %v1661
    %v1702 = vunpack.c.l.b16 %v1662
    %v1703 = vunpack.c.l.b16 %v1663
    %v1704 = vunpack.c.l.b16 %v1664
    %v1705 = vunpack.c.l.b16 %v1665
    %v1706 = vunpack.c.l.b16 %v1666
    %v1707 = vunpack.c.l.b16 %v1667
    %v1708 = vunpack.c.l.b16 %v1668
    %v1709 = vunpack.c.l.b16 %v1669
    %v1710 = vunpack.c.l.b16 %v1670
    %v1711 = vunpack.c.l.b16 %v1671
    %v1712 = vunpack.c.l.b16 %v1672
    %v1713 = vunpack.c.l.b16 %v1673
    %v1714 = vpack.c.b16 %v1699, %v1698
    %v1715 = vpack.c.b16 %v1701, %v1700
    %v1716 = vpack.c.b16 %v1703, %v1702
    %v1717 = vpack.c.b16 %v1705, %v1704
    %v1718 = vpack.c.b16 %v1707, %v1706
    %v1719 = vpack.c.b16 %v1709, %v1708
    %v1720 = vpack.c.b16 %v1711, %v1710
    %v1721 = vpack.c.b16 %v1713, %v1712
    %1730 = vmatprep.subr.bf16.mxu0 0
    %1731 = vmatpush1.bf16.msra.mxu0 %v1714
    %1732 = vmatprep.subr.bf16.mxu0 0
    %1733 = vmatpush1.bf16.msra.mxu0 %v1715
    %1734 = vmatprep.subr.bf16.mxu0 0
    %1735 = vmatpush1.bf16.msra.mxu0 %v1716
    %1736 = vmatprep.subr.bf16.mxu0 0
    %1737 = vmatpush1.bf16.msra.mxu0 %v1717
    %1738 = vmatprep.subr.bf16.mxu0 0
    %1739 = vmatpush1.bf16.msra.mxu0 %v1718
    %1740 = vmatprep.subr.bf16.mxu0 0
    %1741 = vmatpush1.bf16.msra.mxu0 %v1719
    %1742 = vmatprep.subr.bf16.mxu0 0
    %1743 = vmatpush1.bf16.msra.mxu0 %v1720
    %1744 = vmatprep.subr.bf16.mxu0 0
    %1745 = vmatpush1.bf16.msra.mxu0 %v1721
    %1746 = vmatprep.subr.bf16.mxu0 0
    %1747 = vmatpush1.bf16.msra.mxu0 0
    %1748 = vmatprep.subr.bf16.mxu0 0
    %1749 = vmatpush1.bf16.msra.mxu0 0
    %1750 = vmatprep.subr.bf16.mxu0 0
    %1751 = vmatpush1.bf16.msra.mxu0 0
    %1752 = vmatprep.subr.bf16.mxu0 0
    %1753 = vmatpush1.bf16.msra.mxu0 0
    %1754 = vmatprep.subr.bf16.mxu0 0
    %1755 = vmatpush1.bf16.msra.mxu0 0
    %1756 = vmatprep.subr.bf16.mxu0 0
    %1757 = vmatpush1.bf16.msra.mxu0 0
    %1758 = vmatprep.subr.bf16.mxu0 0
    %1759 = vmatpush1.bf16.msra.mxu0 0
    %1760 = vmatprep.subr.bf16.mxu0 0
    %1761 = vmatpush1.bf16.msra.mxu0 0
    %1762 = vmatprep.mubr.bf16.mxu0 0
    %1763 = vmatmul.mubr.bf16.gmra.mrb[0].mxu0 %v1674
    %v1764 = vpop.f32.mrb[0].mxu0
    %v1765 = vadd.f32 %v1680, %v1764
    %v1766 = vpop.f32.mrb[0].mxu0
    %v1767 = vpop.f32.mrb[0].mxu0
    %v1768 = vadd.f32 %v1680, %v1767
    %v1769 = vpop.f32.mrb[0].mxu0
    %1770 = vdwg.mxu0
    %1771 = vmax.xlane.f32.xlu0 %v1765
    %v1772 = vpop.xlane.xlu0 %1771
    %1773 = vmax.xlane.f32.xlu0 %v1768
    %v1774 = vpop.xlane.xlu0 %1773
    %v1775 = vsub.f32 %v1765, %v1772
    %v1776 = vsub.f32 %v1768, %v1774
    %v1777 = vmul.f32 %v1775, 1.442695
    %v1778 = vpow.pop %v1777
    %v1779 = vmul.f32 %v1776, 1.442695
    %v1780 = vpow.pop %v1779
    %1781 = vadd.xlane.f32.xlu0 %v1778
    %v1782 = vpop.xlane.xlu0 %1781
    %1783 = vadd.xlane.f32.xlu0 %v1780
    %v1784 = vpop.xlane.xlu0 %1783
    %v1785 = vrcp.pop %v1782
    %v1786 = vrcp.pop %v1784
    %v1787 = vmul.f32 %v1778, %v1785
    %v1788 = vmul.f32 %v1780, %v1786
    %1789 = vst [vmem:[#allocation31] sm:$0xff] %v1787
    %1790 = vst [vmem:[#allocation31 + $0x8] sm:$0xff] %v1788
    // Predicated region
    $region158: #{tpu_custom_call.1} parent=1 // pred_check
      _
    $region159: #{tpu_custom_call.1} parent=1 // pred_check_branch
      %1792 = sbr.rel (0) target = $region161
    $region160: #{tpu_custom_call.1} parent=1 // pred_region
      %s1794 = ssub.s32 256, 256
      %1795 = vsyncadd [#allocation4], %s1794
      %s1796 = sshll.u32 [#allocation31], 4
      %s1797 = int_to_ptr.vmem [resolvable:$true] %s1796
      %1802 = dma.vmem_to_hbm [thread:$0]  %s1797, 256, %s21, [#allocation4], 128, 128, 8
    $region161: #{tpu_custom_call.1} parent=1 // pred_fallthru
      _
    // Predicated region
    $region162: #{tpu_custom_call.1} parent=1 // pred_check
      _
    $region163: #{tpu_custom_call.1} parent=1 // pred_check_branch
      %1804 = sbr.rel (0) target = $region165
    $region164: #{tpu_custom_call.1} parent=1 // pred_region
      %1805 = dma.done [#allocation4], 256
    $region165: #{tpu_custom_call.1} parent=1 // pred_fallthru
      _
    %1806 = vsyncpa [#allocation3], 1
    %1807 = vsyncpa [#allocation6], 1
    %1808 = vsyncpa [#allocation9], 1
    %1809 = vsyncpa [#allocation12], 1
    %1810 = vsyncpa [#allocation15], 1
    %1811 = vsyncpa [#allocation18], 1
    %1812 = vsyncpa [#allocation21], 1
    %1813 = vsyncpa [#allocation24], 1
    %1814 = vsyncpa [#allocation27], 1
    %1815 = vsyncpa [#allocation30], 1
    %1816 = vsyncpa [#allocation4], 1

</llo_original>
